<compile_context>
chip_gen: v6e
topology: v6e:2x2x1
jax: 0.10.0
libtpu: 0.0.40
codegen_flags: <defaults>
</compile_context>

<pallas_src>
import jax
import jax.numpy as jnp
from jax.experimental import pallas as pl
from jax.experimental.pallas import tpu as pltpu

EPS = 1e-5
HIDDEN = 128


# ----------------------------------------------------------------------------
# Kernel
# ----------------------------------------------------------------------------
def resnet_kernel(
    x_ref,
    w_in_ref, b_in_ref,
    w11_ref, b11_ref, w12_ref, b12_ref,
    w21_ref, b21_ref, w22_ref, b22_ref,
    w_out_ref, b_out_ref,
    o_ref,
):
    def affine(h, w_ref, b_ref):
        return jnp.dot(h, w_ref[...], preferred_element_type=jnp.float32) + b_ref[...]

    # fc_in (+ folded bn_in) -> relu
    h = jnp.maximum(affine(x_ref[...], w_in_ref, b_in_ref), 0.0)

    # residual block 1 (bn1/bn2 folded into fc1/fc2)
    res = h
    o1 = jnp.maximum(affine(h, w11_ref, b11_ref), 0.0)
    h = jnp.maximum(affine(o1, w12_ref, b12_ref) + res, 0.0)
    # TODO(synk): training-mode Dropout(0.3) would use pltpu.prng_seed +
    # pltpu.prng_random_bits; it is identity in inference mode.

    # residual block 2
    res = h
    o1 = jnp.maximum(affine(h, w21_ref, b21_ref), 0.0)
    h = jnp.maximum(affine(o1, w22_ref, b22_ref) + res, 0.0)

    # fc_out padded to 128 output lanes (column 0 is the real logit) -> sigmoid.
    # Keeps the final store lane-dense (no masked vst.msk partial stores).
    o_ref[...] = jax.nn.sigmoid(affine(h, w_out_ref, b_out_ref))


# ----------------------------------------------------------------------------
# Wrapper
# ----------------------------------------------------------------------------
def resnet_forward(x, kparams, *, tile_b=256, hidden=HIDDEN):
    """x: (B, F) float32; kparams: folded/padded params from prepare_kernel_params."""
    B, F = x.shape
    assert F <= hidden

    b_pad = ((B + tile_b - 1) // tile_b) * tile_b
    # Zero-pad batch to a tile multiple and features to a full 128-lane K.
    x_pad = jnp.zeros((b_pad, hidden), jnp.float32).at[:B, :F].set(x)

    grid = (b_pad // tile_b,)
    act_spec = pl.BlockSpec((tile_b, hidden), lambda i: (i, 0))
    w_spec = pl.BlockSpec((hidden, hidden), lambda i: (0, 0))   # VMEM-resident
    b_spec = pl.BlockSpec((1, hidden), lambda i: (0, 0))        # VMEM-resident
    in_specs = [act_spec] + [w_spec, b_spec] * 6

    weight_bytes = sum(int(p.size) * p.dtype.itemsize for p in kparams)
    cost = pl.CostEstimate(
        flops=2 * b_pad * hidden * hidden * 6,
        transcendentals=b_pad * hidden,                  # sigmoid lanes
        bytes_accessed=2 * b_pad * hidden * 4 + weight_bytes,
    )

    out = pl.pallas_call(
        resnet_kernel,
        out_shape=jax.ShapeDtypeStruct((b_pad, hidden), jnp.float32),
        grid=grid,
        in_specs=in_specs,
        out_specs=act_spec,
        compiler_params=pltpu.CompilerParams(
            dimension_semantics=("parallel",),
        ),
        cost_estimate=cost,
    )(x_pad, *kparams)

    # Drop batch padding and the 127 padded logit lanes.
    return out[:B, :1]


# ----------------------------------------------------------------------------
# Parameters (PyTorch-shaped, stored transposed as (in_features, out_features))
# ----------------------------------------------------------------------------
def init_params(key, input_dim, hidden=HIDDEN):
    """Deterministic synthetic parameters mirroring the PyTorch module."""
    ks = iter(jax.random.split(key, 32))

    def linear(fan_in, fan_out):
        bound = 1.0 / jnp.sqrt(fan_in)
        w = jax.random.uniform(next(ks), (fan_in, fan_out), jnp.float32, -bound, bound)
        b = jax.random.uniform(next(ks), (1, fan_out), jnp.float32, -bound, bound)
        return w, b

    def bn(f):
        gamma = jax.random.uniform(next(ks), (1, f), jnp.float32, 0.5, 1.5)
        beta = jax.random.uniform(next(ks), (1, f), jnp.float32, -0.2, 0.2)
        mean = jax.random.uniform(next(ks), (1, f), jnp.float32, -0.5, 0.5)
        var = jax.random.uniform(next(ks), (1, f), jnp.float32, 0.5, 1.5)
        return jnp.concatenate([gamma, beta, mean, var], axis=0)  # (4, f)

    w_in, b_in = linear(input_dim, hidden)
    bn_in = bn(hidden)
    w11, b11 = linear(hidden, hidden)
    bn11 = bn(hidden)
    w12, b12 = linear(hidden, hidden)
    bn12 = bn(hidden)
    w21, b21 = linear(hidden, hidden)
    bn21 = bn(hidden)
    w22, b22 = linear(hidden, hidden)
    bn22 = bn(hidden)
    w_out, b_out = linear(hidden, 1)

    return (w_in, b_in, bn_in,
            w11, b11, bn11, w12, b12, bn12,
            w21, b21, bn21, w22, b22, bn22,
            w_out, b_out)


def _fold_bn(w, b, bn):
    """Fold inference-mode BatchNorm1d into the preceding Linear."""
    gamma, beta, mean, var = bn[0:1], bn[1:2], bn[2:3], bn[3:4]  # each (1, F)
    scale = gamma * jax.lax.rsqrt(var + EPS)
    return w * scale, (b - mean) * scale + beta


def prepare_kernel_params(params, input_dim, hidden=HIDDEN):
    (w_in, b_in, bn_in,
     w11, b11, bn11, w12, b12, bn12,
     w21, b21, bn21, w22, b22, bn22,
     w_out, b_out) = params

    w_in_f, b_in_f = _fold_bn(w_in, b_in, bn_in)
    w11_f, b11_f = _fold_bn(w11, b11, bn11)
    w12_f, b12_f = _fold_bn(w12, b12, bn12)
    w21_f, b21_f = _fold_bn(w21, b21, bn21)
    w22_f, b22_f = _fold_bn(w22, b22, bn22)

    # Pad the input projection rows to a full 128-lane K (zero rows add nothing).
    w_in_p = jnp.zeros((hidden, hidden), jnp.float32).at[:input_dim, :].set(w_in_f)
    # Pad the 128->1 head to 128 output lanes (only column 0 is real).
    w_out_p = jnp.zeros((hidden, hidden), jnp.float32).at[:, :1].set(w_out)
    b_out_p = jnp.zeros((1, hidden), jnp.float32).at[:, :1].set(b_out)

    return (w_in_p, b_in_f,
            w11_f, b11_f, w12_f, b12_f,
            w21_f, b21_f, w22_f, b22_f,
            w_out_p, b_out_p)


# ----------------------------------------------------------------------------
# Pure-JAX reference (unfolded params, explicit inference-mode BN)
# ----------------------------------------------------------------------------
def resnet_reference(x, params):
    (w_in, b_in, bn_in,
     w11, b11, bn11, w12, b12, bn12,
     w21, b21, bn21, w22, b22, bn22,
     w_out, b_out) = params

    def bn(h, p):
        return (h - p[2:3]) * p[0:1] * jax.lax.rsqrt(p[3:4] + EPS) + p[1:2]

    h = jnp.maximum(bn(x @ w_in + b_in, bn_in), 0.0)
    res = h
    o = jnp.maximum(bn(h @ w11 + b11, bn11), 0.0)
    o = bn(o @ w12 + b12, bn12)
    h = jnp.maximum(o + res, 0.0)
    res = h
    o = jnp.maximum(bn(h @ w21 + b21, bn21), 0.0)
    o = bn(o @ w22 + b22, bn22)
    h = jnp.maximum(o + res, 0.0)
    return jax.nn.sigmoid(h @ w_out + b_out)


if __name__ == "__main__":
    key = jax.random.PRNGKey(0)
    k_x, k_p = jax.random.split(key)

    batch, input_dim = 300, 32          # small tabular shapes; exercises 2 grid steps
    x = jax.random.uniform(k_x, (batch, input_dim), jnp.float32)
    params = init_params(k_p, input_dim)
    kparams = prepare_kernel_params(params, input_dim)

    out = resnet_forward(x, kparams, tile_b=256)
    out = jax.block_until_ready(out)

    ref = resnet_reference(x, params)
    assert out.shape == (batch, 1)
    assert jnp.allclose(out, ref, atol=1e-4, rtol=1e-4), "mismatch vs JAX reference"

    print("KERNEL_OK")
</pallas_src>

<mosaic_0001>
module attributes {stable_mosaic.version = 11 : i64} {
  func.func @resnet_kernel(%arg0: i32, %arg1: memref<256x128xf32, #tpu.memory_space<vmem>>, %arg2: memref<128x128xf32, #tpu.memory_space<vmem>>, %arg3: memref<1x128xf32, #tpu.memory_space<vmem>>, %arg4: memref<128x128xf32, #tpu.memory_space<vmem>>, %arg5: memref<1x128xf32, #tpu.memory_space<vmem>>, %arg6: memref<128x128xf32, #tpu.memory_space<vmem>>, %arg7: memref<1x128xf32, #tpu.memory_space<vmem>>, %arg8: memref<128x128xf32, #tpu.memory_space<vmem>>, %arg9: memref<1x128xf32, #tpu.memory_space<vmem>>, %arg10: memref<128x128xf32, #tpu.memory_space<vmem>>, %arg11: memref<1x128xf32, #tpu.memory_space<vmem>>, %arg12: memref<128x128xf32, #tpu.memory_space<vmem>>, %arg13: memref<1x128xf32, #tpu.memory_space<vmem>>, %arg14: memref<256x128xf32, #tpu.memory_space<vmem>>) attributes {dimension_semantics = [#tpu.dimension_semantics<parallel>], iteration_bounds = array<i64: 2>, scalar_prefetch = 0 : i64, scratch_operands = 0 : i64, tpu.core_type = #tpu.core_type<tc>, window_params = [{transform_indices = @transform_0, window_bounds = array<i64: 256, 128>}, {pipeline_mode = #tpu.pipeline_mode<synchronous>, transform_indices = @transform_1, window_bounds = array<i64: 128, 128>}, {pipeline_mode = #tpu.pipeline_mode<synchronous>, transform_indices = @transform_2, window_bounds = array<i64: 1, 128>}, {pipeline_mode = #tpu.pipeline_mode<synchronous>, transform_indices = @transform_3, window_bounds = array<i64: 128, 128>}, {pipeline_mode = #tpu.pipeline_mode<synchronous>, transform_indices = @transform_4, window_bounds = array<i64: 1, 128>}, {pipeline_mode = #tpu.pipeline_mode<synchronous>, transform_indices = @transform_5, window_bounds = array<i64: 128, 128>}, {pipeline_mode = #tpu.pipeline_mode<synchronous>, transform_indices = @transform_6, window_bounds = array<i64: 1, 128>}, {pipeline_mode = #tpu.pipeline_mode<synchronous>, transform_indices = @transform_7, window_bounds = array<i64: 128, 128>}, {pipeline_mode = #tpu.pipeline_mode<synchronous>, transform_indices = @transform_8, window_bounds = array<i64: 1, 128>}, {pipeline_mode = #tpu.pipeline_mode<synchronous>, transform_indices = @transform_9, window_bounds = array<i64: 128, 128>}, {pipeline_mode = #tpu.pipeline_mode<synchronous>, transform_indices = @transform_10, window_bounds = array<i64: 1, 128>}, {pipeline_mode = #tpu.pipeline_mode<synchronous>, transform_indices = @transform_11, window_bounds = array<i64: 128, 128>}, {pipeline_mode = #tpu.pipeline_mode<synchronous>, transform_indices = @transform_12, window_bounds = array<i64: 1, 128>}, {transform_indices = @transform_13, window_bounds = array<i64: 256, 128>}]} {
    %c0 = arith.constant 0 : index
    %c0_0 = arith.constant 0 : index
    %0 = vector.load %arg1[%c0, %c0_0] : memref<256x128xf32, #tpu.memory_space<vmem>>, vector<256x128xf32>
    %c0_1 = arith.constant 0 : index
    %c0_2 = arith.constant 0 : index
    %1 = vector.load %arg2[%c0_1, %c0_2] : memref<128x128xf32, #tpu.memory_space<vmem>>, vector<128x128xf32>
    %cst = arith.constant dense<0.000000e+00> : vector<256x128xf32>
    %2 = tpu.matmul %0, %1, %cst {dimension_numbers = #tpu.dot_dimension_numbers<[1], [0], [0], [1], [0, 0, 1, 1], [], []>} : vector<256x128xf32>, vector<128x128xf32>, vector<256x128xf32> -> vector<256x128xf32>
    %c0_3 = arith.constant 0 : index
    %c0_4 = arith.constant 0 : index
    %3 = vector.load %arg3[%c0_3, %c0_4] : memref<1x128xf32, #tpu.memory_space<vmem>>, vector<1x128xf32>
    %4 = vector.broadcast %3 : vector<1x128xf32> to vector<256x128xf32>
    %5 = arith.addf %2, %4 : vector<256x128xf32>
    %cst_5 = arith.constant 0.000000e+00 : f32
    %6 = vector.broadcast %cst_5 : f32 to vector<256x128xf32>
    %7 = arith.maximumf %5, %6 : vector<256x128xf32>
    %c0_6 = arith.constant 0 : index
    %c0_7 = arith.constant 0 : index
    %8 = vector.load %arg4[%c0_6, %c0_7] : memref<128x128xf32, #tpu.memory_space<vmem>>, vector<128x128xf32>
    %cst_8 = arith.constant dense<0.000000e+00> : vector<256x128xf32>
    %9 = tpu.matmul %7, %8, %cst_8 {dimension_numbers = #tpu.dot_dimension_numbers<[1], [0], [0], [1], [0, 0, 1, 1], [], []>} : vector<256x128xf32>, vector<128x128xf32>, vector<256x128xf32> -> vector<256x128xf32>
    %c0_9 = arith.constant 0 : index
    %c0_10 = arith.constant 0 : index
    %10 = vector.load %arg5[%c0_9, %c0_10] : memref<1x128xf32, #tpu.memory_space<vmem>>, vector<1x128xf32>
    %11 = vector.broadcast %10 : vector<1x128xf32> to vector<256x128xf32>
    %12 = arith.addf %9, %11 : vector<256x128xf32>
    %cst_11 = arith.constant 0.000000e+00 : f32
    %13 = vector.broadcast %cst_11 : f32 to vector<256x128xf32>
    %14 = arith.maximumf %12, %13 : vector<256x128xf32>
    %c0_12 = arith.constant 0 : index
    %c0_13 = arith.constant 0 : index
    %15 = vector.load %arg6[%c0_12, %c0_13] : memref<128x128xf32, #tpu.memory_space<vmem>>, vector<128x128xf32>
    %cst_14 = arith.constant dense<0.000000e+00> : vector<256x128xf32>
    %16 = tpu.matmul %14, %15, %cst_14 {dimension_numbers = #tpu.dot_dimension_numbers<[1], [0], [0], [1], [0, 0, 1, 1], [], []>} : vector<256x128xf32>, vector<128x128xf32>, vector<256x128xf32> -> vector<256x128xf32>
    %c0_15 = arith.constant 0 : index
    %c0_16 = arith.constant 0 : index
    %17 = vector.load %arg7[%c0_15, %c0_16] : memref<1x128xf32, #tpu.memory_space<vmem>>, vector<1x128xf32>
    %18 = vector.broadcast %17 : vector<1x128xf32> to vector<256x128xf32>
    %19 = arith.addf %16, %18 : vector<256x128xf32>
    %20 = arith.addf %19, %7 : vector<256x128xf32>
    %cst_17 = arith.constant 0.000000e+00 : f32
    %21 = vector.broadcast %cst_17 : f32 to vector<256x128xf32>
    %22 = arith.maximumf %20, %21 : vector<256x128xf32>
    %c0_18 = arith.constant 0 : index
    %c0_19 = arith.constant 0 : index
    %23 = vector.load %arg8[%c0_18, %c0_19] : memref<128x128xf32, #tpu.memory_space<vmem>>, vector<128x128xf32>
    %cst_20 = arith.constant dense<0.000000e+00> : vector<256x128xf32>
    %24 = tpu.matmul %22, %23, %cst_20 {dimension_numbers = #tpu.dot_dimension_numbers<[1], [0], [0], [1], [0, 0, 1, 1], [], []>} : vector<256x128xf32>, vector<128x128xf32>, vector<256x128xf32> -> vector<256x128xf32>
    %c0_21 = arith.constant 0 : index
    %c0_22 = arith.constant 0 : index
    %25 = vector.load %arg9[%c0_21, %c0_22] : memref<1x128xf32, #tpu.memory_space<vmem>>, vector<1x128xf32>
    %26 = vector.broadcast %25 : vector<1x128xf32> to vector<256x128xf32>
    %27 = arith.addf %24, %26 : vector<256x128xf32>
    %cst_23 = arith.constant 0.000000e+00 : f32
    %28 = vector.broadcast %cst_23 : f32 to vector<256x128xf32>
    %29 = arith.maximumf %27, %28 : vector<256x128xf32>
    %c0_24 = arith.constant 0 : index
    %c0_25 = arith.constant 0 : index
    %30 = vector.load %arg10[%c0_24, %c0_25] : memref<128x128xf32, #tpu.memory_space<vmem>>, vector<128x128xf32>
    %cst_26 = arith.constant dense<0.000000e+00> : vector<256x128xf32>
    %31 = tpu.matmul %29, %30, %cst_26 {dimension_numbers = #tpu.dot_dimension_numbers<[1], [0], [0], [1], [0, 0, 1, 1], [], []>} : vector<256x128xf32>, vector<128x128xf32>, vector<256x128xf32> -> vector<256x128xf32>
    %c0_27 = arith.constant 0 : index
    %c0_28 = arith.constant 0 : index
    %32 = vector.load %arg11[%c0_27, %c0_28] : memref<1x128xf32, #tpu.memory_space<vmem>>, vector<1x128xf32>
    %33 = vector.broadcast %32 : vector<1x128xf32> to vector<256x128xf32>
    %34 = arith.addf %31, %33 : vector<256x128xf32>
    %35 = arith.addf %34, %22 : vector<256x128xf32>
    %cst_29 = arith.constant 0.000000e+00 : f32
    %36 = vector.broadcast %cst_29 : f32 to vector<256x128xf32>
    %37 = arith.maximumf %35, %36 : vector<256x128xf32>
    %c0_30 = arith.constant 0 : index
    %c0_31 = arith.constant 0 : index
    %38 = vector.load %arg12[%c0_30, %c0_31] : memref<128x128xf32, #tpu.memory_space<vmem>>, vector<128x128xf32>
    %cst_32 = arith.constant dense<0.000000e+00> : vector<256x128xf32>
    %39 = tpu.matmul %37, %38, %cst_32 {dimension_numbers = #tpu.dot_dimension_numbers<[1], [0], [0], [1], [0, 0, 1, 1], [], []>} : vector<256x128xf32>, vector<128x128xf32>, vector<256x128xf32> -> vector<256x128xf32>
    %c0_33 = arith.constant 0 : index
    %c0_34 = arith.constant 0 : index
    %40 = vector.load %arg13[%c0_33, %c0_34] : memref<1x128xf32, #tpu.memory_space<vmem>>, vector<1x128xf32>
    %41 = vector.broadcast %40 : vector<1x128xf32> to vector<256x128xf32>
    %42 = arith.addf %39, %41 : vector<256x128xf32>
    %43 = arith.negf %42 : vector<256x128xf32>
    %44 = math.exp %43 : vector<256x128xf32>
    %cst_35 = arith.constant 1.000000e+00 : f32
    %45 = vector.broadcast %cst_35 : f32 to vector<256x128xf32>
    %46 = arith.addf %45, %44 : vector<256x128xf32>
    %47 = arith.divf %45, %46 : vector<256x128xf32>
    %c0_36 = arith.constant 0 : index
    %c0_37 = arith.constant 0 : index
    %48 = vector.load %arg14[%c0_36, %c0_37] : memref<256x128xf32, #tpu.memory_space<vmem>>, vector<256x128xf32>
    tpu.vector_store %arg14[%c0_36, %c0_37], %47 {strides = array<i32>} : memref<256x128xf32, #tpu.memory_space<vmem>>, vector<256x128xf32>,
    return
  }
  func.func @transform_0(%arg0: i32) -> (i32, i32) {
    %c0_i32 = arith.constant 0 : i32
    %c0_i32_0 = arith.constant 0 : i32
    return %arg0, %c0_i32 : i32, i32
  }
  func.func @transform_1(%arg0: i32) -> (i32, i32) {
    %c0_i32 = arith.constant 0 : i32
    %c0_i32_0 = arith.constant 0 : i32
    %c0_i32_1 = arith.constant 0 : i32
    return %c0_i32, %c0_i32_0 : i32, i32
  }
  func.func @transform_2(%arg0: i32) -> (i32, i32) {
    %c0_i32 = arith.constant 0 : i32
    %c0_i32_0 = arith.constant 0 : i32
    %c0_i32_1 = arith.constant 0 : i32
    return %c0_i32, %c0_i32_0 : i32, i32
  }
  func.func @transform_3(%arg0: i32) -> (i32, i32) {
    %c0_i32 = arith.constant 0 : i32
    %c0_i32_0 = arith.constant 0 : i32
    %c0_i32_1 = arith.constant 0 : i32
    return %c0_i32, %c0_i32_0 : i32, i32
  }
  func.func @transform_4(%arg0: i32) -> (i32, i32) {
    %c0_i32 = arith.constant 0 : i32
    %c0_i32_0 = arith.constant 0 : i32
    %c0_i32_1 = arith.constant 0 : i32
    return %c0_i32, %c0_i32_0 : i32, i32
  }
  func.func @transform_5(%arg0: i32) -> (i32, i32) {
    %c0_i32 = arith.constant 0 : i32
    %c0_i32_0 = arith.constant 0 : i32
    %c0_i32_1 = arith.constant 0 : i32
    return %c0_i32, %c0_i32_0 : i32, i32
  }
  func.func @transform_6(%arg0: i32) -> (i32, i32) {
    %c0_i32 = arith.constant 0 : i32
    %c0_i32_0 = arith.constant 0 : i32
    %c0_i32_1 = arith.constant 0 : i32
    return %c0_i32, %c0_i32_0 : i32, i32
  }
  func.func @transform_7(%arg0: i32) -> (i32, i32) {
    %c0_i32 = arith.constant 0 : i32
    %c0_i32_0 = arith.constant 0 : i32
    %c0_i32_1 = arith.constant 0 : i32
    return %c0_i32, %c0_i32_0 : i32, i32
  }
  func.func @transform_8(%arg0: i32) -> (i32, i32) {
    %c0_i32 = arith.constant 0 : i32
    %c0_i32_0 = arith.constant 0 : i32
    %c0_i32_1 = arith.constant 0 : i32
    return %c0_i32, %c0_i32_0 : i32, i32
  }
  func.func @transform_9(%arg0: i32) -> (i32, i32) {
    %c0_i32 = arith.constant 0 : i32
    %c0_i32_0 = arith.constant 0 : i32
    %c0_i32_1 = arith.constant 0 : i32
    return %c0_i32, %c0_i32_0 : i32, i32
  }
  func.func @transform_10(%arg0: i32) -> (i32, i32) {
    %c0_i32 = arith.constant 0 : i32
    %c0_i32_0 = arith.constant 0 : i32
    %c0_i32_1 = arith.constant 0 : i32
    return %c0_i32, %c0_i32_0 : i32, i32
  }
  func.func @transform_11(%arg0: i32) -> (i32, i32) {
    %c0_i32 = arith.constant 0 : i32
    %c0_i32_0 = arith.constant 0 : i32
    %c0_i32_1 = arith.constant 0 : i32
    return %c0_i32, %c0_i32_0 : i32, i32
  }
  func.func @transform_12(%arg0: i32) -> (i32, i32) {
    %c0_i32 = arith.constant 0 : i32
    %c0_i32_0 = arith.constant 0 : i32
    %c0_i32_1 = arith.constant 0 : i32
    return %c0_i32, %c0_i32_0 : i32, i32
  }
  func.func @transform_13(%arg0: i32) -> (i32, i32) {
    %c0_i32 = arith.constant 0 : i32
    %c0_i32_0 = arith.constant 0 : i32
    return %arg0, %c0_i32 : i32, i32
  }
}

</mosaic_0001>

<llo_original>
// kernel: tpu_custom_call.1
$region0: #{tpu_custom_call.1}
  #allocation0 [shape = 'u32[]', space=smem, size = 0x4, offset = 0x4, fixed_abs, tag = 'smem constant byte address 0x4 - core index']
  #allocation1 [shape = 'u32[144,128]{1,0:T(1,128)}', space=vmem, size = 0x12000, scoped, tag = 'internal scratch']
  %s0 = inlined_call_operand.hbm [shape: f32[512,128], index: 0, kind: input, shape index: {}]
  %s1 = inlined_call_operand.hbm [shape: f32[128,128], index: 1, kind: input, shape index: {}]
  %s2 = inlined_call_operand.vmem [shape: f32[1,128], index: 2, kind: input, shape index: {}]
  %s3 = inlined_call_operand.hbm [shape: f32[128,128], index: 3, kind: input, shape index: {}]
  %s4 = inlined_call_operand.vmem [shape: f32[1,128], index: 4, kind: input, shape index: {}]
  %s5 = inlined_call_operand.hbm [shape: f32[128,128], index: 5, kind: input, shape index: {}]
  %s6 = inlined_call_operand.vmem [shape: f32[1,128], index: 6, kind: input, shape index: {}]
  %s7 = inlined_call_operand.hbm [shape: f32[128,128], index: 7, kind: input, shape index: {}]
  %s8 = inlined_call_operand.vmem [shape: f32[1,128], index: 8, kind: input, shape index: {}]
  %s9 = inlined_call_operand.hbm [shape: f32[128,128], index: 9, kind: input, shape index: {}]
  %s10 = inlined_call_operand.vmem [shape: f32[1,128], index: 10, kind: input, shape index: {}]
  %s11 = inlined_call_operand.hbm [shape: f32[128,128], index: 11, kind: input, shape index: {}]
  %s12 = inlined_call_operand.vmem [shape: f32[1,128], index: 12, kind: input, shape index: {}]
  %s13 = inlined_call_operand.hbm [shape: f32[512,128], index: 13, kind: output, shape index: {}]
  %s14 = sld [smem:[#allocation0]]
  $region113: #{tpu_custom_call.1} parent=0
    _
  %s16 = ssub.s32 1, %s14
  %s17 = scalar_select 0, %s16, %s14
  $region1: #{tpu_custom_call.1} parent=0
    #allocation2 [shape = 'u8[262144]{0}', space=vmem, size = 0x40000, scoped, tag = 'input window, operand 0']
    #allocation3 [shape = 's32[2]{0}', space=sflag, size = 0x8, scoped, tag = 'scoped memory for tpu_custom_call.1']
    #allocation4 [shape = 's32[2]{0}', space=sflag, size = 0x8, scoped, tag = 'scoped memory for tpu_custom_call.1']
    #allocation5 [shape = 'u8[65536]{0}', space=vmem, size = 0x10000, scoped, tag = 'input window, operand 1, single buffered']
    #allocation6 [shape = 's32[1]{0}', space=sflag, size = 0x4, scoped, tag = 'scoped memory for tpu_custom_call.1']
    #allocation7 [shape = 'u8[65536]{0}', space=vmem, size = 0x10000, scoped, tag = 'input window, operand 3, single buffered']
    #allocation8 [shape = 'u8[65536]{0}', space=vmem, size = 0x10000, scoped, tag = 'input window, operand 5, single buffered']
    #allocation9 [shape = 's32[1]{0}', space=sflag, size = 0x4, scoped, tag = 'scoped memory for tpu_custom_call.1']
    #allocation10 [shape = 'u8[65536]{0}', space=vmem, size = 0x10000, scoped, tag = 'input window, operand 7, single buffered']
    #allocation11 [shape = 'u8[65536]{0}', space=vmem, size = 0x10000, scoped, tag = 'input window, operand 9, single buffered']
    #allocation12 [shape = 's32[1]{0}', space=sflag, size = 0x4, scoped, tag = 'scoped memory for tpu_custom_call.1']
    #allocation13 [shape = 'u8[65536]{0}', space=vmem, size = 0x10000, scoped, tag = 'input window, operand 11, single buffered']
    #allocation14 [shape = 'u8[262144]{0}', space=vmem, size = 0x40000, scoped, tag = 'output window, operand 0']
    %18 = vsyncpa [#allocation3], 0
    %s19 = scalar_lea.sflag [#allocation3], 1
    %20 = vsyncpa %s19, 0
    %21 = vsyncpa [#allocation6], 0
    %22 = vsyncpa [#allocation9], 0
    %23 = vsyncpa [#allocation12], 0
    %24 = vsyncpa [#allocation4], 0
    %s25 = scalar_lea.sflag [#allocation4], 1
    %26 = vsyncpa %s25, 0
    loop: start=0, step=1, limit=4
    $region2: #{tpu_custom_call.1} parent=1 // loop_pre_header
      _
    $region3: #{tpu_custom_call.1} parent=1 // loop_header
      %s28 = sphi 0, %s32
      %p29 = scmp.ge.s32.totalorder %s28, 4
      %s38 = sphi 0, %s40
      %s41 = sphi 0, %s38
      %s42 = sphi 0, %s41
      %s58 = sphi 0, %s42
      %s62 = sphi 0, %s62
      %s64 = sphi 0, %s62
      %s65 = sphi 0, %s64
      %s79 = sphi 0, %s65
      %s83 = sphi 0, %s83
      %s85 = sphi 0, %s83
      %s86 = sphi 0, %s85
      %s100 = sphi 0, %s86
      %s104 = sphi 0, %s104
      %s106 = sphi 0, %s104
      %s107 = sphi 0, %s106
      %s121 = sphi 0, %s107
      %s125 = sphi 0, %s125
      %s127 = sphi 0, %s125
      %s128 = sphi 0, %s127
      %s142 = sphi 0, %s128
      %s146 = sphi 0, %s146
      %s148 = sphi 0, %s146
      %s149 = sphi 0, %s148
      %s163 = sphi 0, %s149
      %s167 = sphi 0, %s167
      %s169 = sphi 0, %s167
      %s170 = sphi 0, %s169
      %s184 = sphi 0, %s170
      %s188 = sphi 0, %s188
      %s190 = sphi 0, %s188
      %s191 = sphi 0, %s190
      %s205 = sphi 0, %s191
      %s209 = sphi 0, %s209
      %s211 = sphi 0, %s209
      %s212 = sphi 0, %s211
      %s226 = sphi 0, %s212
      %s230 = sphi 0, %s230
      %s232 = sphi 0, %s230
      %s233 = sphi 0, %s232
      %s247 = sphi 0, %s233
      %s251 = sphi 0, %s251
      %s253 = sphi 0, %s251
      %s254 = sphi 0, %s253
      %s268 = sphi 0, %s254
      %s272 = sphi 0, %s272
      %s274 = sphi 0, %s272
      %s275 = sphi 0, %s274
      %s289 = sphi 0, %s275
      %s293 = sphi 0, %s293
      %s295 = sphi 0, %s293
      %s296 = sphi 0, %s295
      %s310 = sphi 0, %s296
      %s316 = sphi 0, %s318
      %s319 = sphi 0, %s316
      %s320 = sphi 0, %s319
      %s336 = sphi 0, %s320
    $region4: #{tpu_custom_call.1} parent=1 // loop_header_branch
      %31 = sbr.rel (%p29) target = $region8
    $region5: #{tpu_custom_call.1} parent=1 // loop_body
      %s33 = ssub.s32 %s28, 1
      %s34 = ssub.s32 %s28, 2
      %s35 = sadd.s32 %s28, 1
      %s36 = ssub.s32 %s28, %s35
      %p37 = scmp.eq.s32.totalorder %s36, 0
      %s39 = sadd.s32 %s38, 1
      %s40 = scalar_select %p37, %s38, %s39
      %p43 = pneg %p37
      %p44 = scmp.eq.s32.totalorder %s28, 1
      %p45 = por %p43, %p44
      %p46 = scmp.ne.s32.totalorder %s38, %s41
      %p47 = scmp.eq.s32.totalorder %s28, 0
      %p48 = por %p46, %p47
      %p49 = scmp.ne.s32.totalorder %s38, %s41
      %p50 = scmp.eq.s32.totalorder %s33, 1
      %p51 = por %p49, %p50
      %p52 = scmp.ne.s32.totalorder %s41, %s42
      %p53 = scmp.eq.s32.totalorder %s33, 0
      %p54 = por %p52, %p53
      %p55 = scmp.ne.s32.totalorder %s41, %s42
      %p56 = scmp.eq.s32.totalorder %s34, 1
      %p57 = por %p55, %p56
      %p59 = scmp.ne.s32.totalorder %s42, %s58
      %p60 = scmp.eq.s32.totalorder %s34, 0
      %p61 = por %p59, %p60
      %s63 = sadd.s32 %s62, 1
      %p66 = scmp.eq.s32.totalorder %s28, 1
      %p67 = scmp.ne.s32.totalorder %s62, %s64
      %p68 = scmp.eq.s32.totalorder %s28, 0
      %p69 = por %p67, %p68
      %p70 = scmp.ne.s32.totalorder %s62, %s64
      %p71 = scmp.eq.s32.totalorder %s33, 1
      %p72 = por %p70, %p71
      %p73 = scmp.ne.s32.totalorder %s64, %s65
      %p74 = scmp.eq.s32.totalorder %s33, 0
      %p75 = por %p73, %p74
      %p76 = scmp.ne.s32.totalorder %s64, %s65
      %p77 = scmp.eq.s32.totalorder %s34, 1
      %p78 = por %p76, %p77
      %p80 = scmp.ne.s32.totalorder %s65, %s79
      %p81 = scmp.eq.s32.totalorder %s34, 0
      %p82 = por %p80, %p81
      %s84 = sadd.s32 %s83, 1
      %p87 = scmp.eq.s32.totalorder %s28, 1
      %p88 = scmp.ne.s32.totalorder %s83, %s85
      %p89 = scmp.eq.s32.totalorder %s28, 0
      %p90 = por %p88, %p89
      %p91 = scmp.ne.s32.totalorder %s83, %s85
      %p92 = scmp.eq.s32.totalorder %s33, 1
      %p93 = por %p91, %p92
      %p94 = scmp.ne.s32.totalorder %s85, %s86
      %p95 = scmp.eq.s32.totalorder %s33, 0
      %p96 = por %p94, %p95
      %p97 = scmp.ne.s32.totalorder %s85, %s86
      %p98 = scmp.eq.s32.totalorder %s34, 1
      %p99 = por %p97, %p98
      %p101 = scmp.ne.s32.totalorder %s86, %s100
      %p102 = scmp.eq.s32.totalorder %s34, 0
      %p103 = por %p101, %p102
      %s105 = sadd.s32 %s104, 1
      %p108 = scmp.eq.s32.totalorder %s28, 1
      %p109 = scmp.ne.s32.totalorder %s104, %s106
      %p110 = scmp.eq.s32.totalorder %s28, 0
      %p111 = por %p109, %p110
      %p112 = scmp.ne.s32.totalorder %s104, %s106
      %p113 = scmp.eq.s32.totalorder %s33, 1
      %p114 = por %p112, %p113
      %p115 = scmp.ne.s32.totalorder %s106, %s107
      %p116 = scmp.eq.s32.totalorder %s33, 0
      %p117 = por %p115, %p116
      %p118 = scmp.ne.s32.totalorder %s106, %s107
      %p119 = scmp.eq.s32.totalorder %s34, 1
      %p120 = por %p118, %p119
      %p122 = scmp.ne.s32.totalorder %s107, %s121
      %p123 = scmp.eq.s32.totalorder %s34, 0
      %p124 = por %p122, %p123
      %s126 = sadd.s32 %s125, 1
      %p129 = scmp.eq.s32.totalorder %s28, 1
      %p130 = scmp.ne.s32.totalorder %s125, %s127
      %p131 = scmp.eq.s32.totalorder %s28, 0
      %p132 = por %p130, %p131
      %p133 = scmp.ne.s32.totalorder %s125, %s127
      %p134 = scmp.eq.s32.totalorder %s33, 1
      %p135 = por %p133, %p134
      %p136 = scmp.ne.s32.totalorder %s127, %s128
      %p137 = scmp.eq.s32.totalorder %s33, 0
      %p138 = por %p136, %p137
      %p139 = scmp.ne.s32.totalorder %s127, %s128
      %p140 = scmp.eq.s32.totalorder %s34, 1
      %p141 = por %p139, %p140
      %p143 = scmp.ne.s32.totalorder %s128, %s142
      %p144 = scmp.eq.s32.totalorder %s34, 0
      %p145 = por %p143, %p144
      %s147 = sadd.s32 %s146, 1
      %p150 = scmp.eq.s32.totalorder %s28, 1
      %p151 = scmp.ne.s32.totalorder %s146, %s148
      %p152 = scmp.eq.s32.totalorder %s28, 0
      %p153 = por %p151, %p152
      %p154 = scmp.ne.s32.totalorder %s146, %s148
      %p155 = scmp.eq.s32.totalorder %s33, 1
      %p156 = por %p154, %p155
      %p157 = scmp.ne.s32.totalorder %s148, %s149
      %p158 = scmp.eq.s32.totalorder %s33, 0
      %p159 = por %p157, %p158
      %p160 = scmp.ne.s32.totalorder %s148, %s149
      %p161 = scmp.eq.s32.totalorder %s34, 1
      %p162 = por %p160, %p161
      %p164 = scmp.ne.s32.totalorder %s149, %s163
      %p165 = scmp.eq.s32.totalorder %s34, 0
      %p166 = por %p164, %p165
      %s168 = sadd.s32 %s167, 1
      %p171 = scmp.eq.s32.totalorder %s28, 1
      %p172 = scmp.ne.s32.totalorder %s167, %s169
      %p173 = scmp.eq.s32.totalorder %s28, 0
      %p174 = por %p172, %p173
      %p175 = scmp.ne.s32.totalorder %s167, %s169
      %p176 = scmp.eq.s32.totalorder %s33, 1
      %p177 = por %p175, %p176
      %p178 = scmp.ne.s32.totalorder %s169, %s170
      %p179 = scmp.eq.s32.totalorder %s33, 0
      %p180 = por %p178, %p179
      %p181 = scmp.ne.s32.totalorder %s169, %s170
      %p182 = scmp.eq.s32.totalorder %s34, 1
      %p183 = por %p181, %p182
      %p185 = scmp.ne.s32.totalorder %s170, %s184
      %p186 = scmp.eq.s32.totalorder %s34, 0
      %p187 = por %p185, %p186
      %s189 = sadd.s32 %s188, 1
      %p192 = scmp.eq.s32.totalorder %s28, 1
      %p193 = scmp.ne.s32.totalorder %s188, %s190
      %p194 = scmp.eq.s32.totalorder %s28, 0
      %p195 = por %p193, %p194
      %p196 = scmp.ne.s32.totalorder %s188, %s190
      %p197 = scmp.eq.s32.totalorder %s33, 1
      %p198 = por %p196, %p197
      %p199 = scmp.ne.s32.totalorder %s190, %s191
      %p200 = scmp.eq.s32.totalorder %s33, 0
      %p201 = por %p199, %p200
      %p202 = scmp.ne.s32.totalorder %s190, %s191
      %p203 = scmp.eq.s32.totalorder %s34, 1
      %p204 = por %p202, %p203
      %p206 = scmp.ne.s32.totalorder %s191, %s205
      %p207 = scmp.eq.s32.totalorder %s34, 0
      %p208 = por %p206, %p207
      %s210 = sadd.s32 %s209, 1
      %p213 = scmp.eq.s32.totalorder %s28, 1
      %p214 = scmp.ne.s32.totalorder %s209, %s211
      %p215 = scmp.eq.s32.totalorder %s28, 0
      %p216 = por %p214, %p215
      %p217 = scmp.ne.s32.totalorder %s209, %s211
      %p218 = scmp.eq.s32.totalorder %s33, 1
      %p219 = por %p217, %p218
      %p220 = scmp.ne.s32.totalorder %s211, %s212
      %p221 = scmp.eq.s32.totalorder %s33, 0
      %p222 = por %p220, %p221
      %p223 = scmp.ne.s32.totalorder %s211, %s212
      %p224 = scmp.eq.s32.totalorder %s34, 1
      %p225 = por %p223, %p224
      %p227 = scmp.ne.s32.totalorder %s212, %s226
      %p228 = scmp.eq.s32.totalorder %s34, 0
      %p229 = por %p227, %p228
      %s231 = sadd.s32 %s230, 1
      %p234 = scmp.eq.s32.totalorder %s28, 1
      %p235 = scmp.ne.s32.totalorder %s230, %s232
      %p236 = scmp.eq.s32.totalorder %s28, 0
      %p237 = por %p235, %p236
      %p238 = scmp.ne.s32.totalorder %s230, %s232
      %p239 = scmp.eq.s32.totalorder %s33, 1
      %p240 = por %p238, %p239
      %p241 = scmp.ne.s32.totalorder %s232, %s233
      %p242 = scmp.eq.s32.totalorder %s33, 0
      %p243 = por %p241, %p242
      %p244 = scmp.ne.s32.totalorder %s232, %s233
      %p245 = scmp.eq.s32.totalorder %s34, 1
      %p246 = por %p244, %p245
      %p248 = scmp.ne.s32.totalorder %s233, %s247
      %p249 = scmp.eq.s32.totalorder %s34, 0
      %p250 = por %p248, %p249
      %s252 = sadd.s32 %s251, 1
      %p255 = scmp.eq.s32.totalorder %s28, 1
      %p256 = scmp.ne.s32.totalorder %s251, %s253
      %p257 = scmp.eq.s32.totalorder %s28, 0
      %p258 = por %p256, %p257
      %p259 = scmp.ne.s32.totalorder %s251, %s253
      %p260 = scmp.eq.s32.totalorder %s33, 1
      %p261 = por %p259, %p260
      %p262 = scmp.ne.s32.totalorder %s253, %s254
      %p263 = scmp.eq.s32.totalorder %s33, 0
      %p264 = por %p262, %p263
      %p265 = scmp.ne.s32.totalorder %s253, %s254
      %p266 = scmp.eq.s32.totalorder %s34, 1
      %p267 = por %p265, %p266
      %p269 = scmp.ne.s32.totalorder %s254, %s268
      %p270 = scmp.eq.s32.totalorder %s34, 0
      %p271 = por %p269, %p270
      %s273 = sadd.s32 %s272, 1
      %p276 = scmp.eq.s32.totalorder %s28, 1
      %p277 = scmp.ne.s32.totalorder %s272, %s274
      %p278 = scmp.eq.s32.totalorder %s28, 0
      %p279 = por %p277, %p278
      %p280 = scmp.ne.s32.totalorder %s272, %s274
      %p281 = scmp.eq.s32.totalorder %s33, 1
      %p282 = por %p280, %p281
      %p283 = scmp.ne.s32.totalorder %s274, %s275
      %p284 = scmp.eq.s32.totalorder %s33, 0
      %p285 = por %p283, %p284
      %p286 = scmp.ne.s32.totalorder %s274, %s275
      %p287 = scmp.eq.s32.totalorder %s34, 1
      %p288 = por %p286, %p287
      %p290 = scmp.ne.s32.totalorder %s275, %s289
      %p291 = scmp.eq.s32.totalorder %s34, 0
      %p292 = por %p290, %p291
      %s294 = sadd.s32 %s293, 1
      %p297 = scmp.eq.s32.totalorder %s28, 1
      %p298 = scmp.ne.s32.totalorder %s293, %s295
      %p299 = scmp.eq.s32.totalorder %s28, 0
      %p300 = por %p298, %p299
      %p301 = scmp.ne.s32.totalorder %s293, %s295
      %p302 = scmp.eq.s32.totalorder %s33, 1
      %p303 = por %p301, %p302
      %p304 = scmp.ne.s32.totalorder %s295, %s296
      %p305 = scmp.eq.s32.totalorder %s33, 0
      %p306 = por %p304, %p305
      %p307 = scmp.ne.s32.totalorder %s295, %s296
      %p308 = scmp.eq.s32.totalorder %s34, 1
      %p309 = por %p307, %p308
      %p311 = scmp.ne.s32.totalorder %s296, %s310
      %p312 = scmp.eq.s32.totalorder %s34, 0
      %p313 = por %p311, %p312
      %s314 = ssub.s32 %s28, %s35
      %p315 = scmp.eq.s32.totalorder %s314, 0
      %s317 = sadd.s32 %s316, 1
      %s318 = scalar_select %p315, %s316, %s317
      %p321 = pneg %p315
      %p322 = scmp.eq.s32.totalorder %s28, 1
      %p323 = por %p321, %p322
      %p324 = scmp.ne.s32.totalorder %s316, %s319
      %p325 = scmp.eq.s32.totalorder %s28, 0
      %p326 = por %p324, %p325
      %p327 = scmp.ne.s32.totalorder %s316, %s319
      %p328 = scmp.eq.s32.totalorder %s33, 1
      %p329 = por %p327, %p328
      %p330 = scmp.ne.s32.totalorder %s319, %s320
      %p331 = scmp.eq.s32.totalorder %s33, 0
      %p332 = por %p330, %p331
      %p333 = scmp.ne.s32.totalorder %s319, %s320
      %p334 = scmp.eq.s32.totalorder %s34, 1
      %p335 = por %p333, %p334
      %p337 = scmp.ne.s32.totalorder %s320, %s336
      %p338 = scmp.eq.s32.totalorder %s34, 0
      %p339 = por %p337, %p338
      %p340 = scmp.le.s32.totalorder 1, %s28
      %p341 = scmp.lt.s32.totalorder %s28, 3
      %p342 = pnand %p340, %p341
      %p343 = pneg %p342
      // Predicated region
      $region9: #{tpu_custom_call.1} parent=5 // pred_check
        _
      $region10: #{tpu_custom_call.1} parent=5 // pred_check_branch
        %345 = sbr.rel (%p342) target = $region12
      $region11: #{tpu_custom_call.1} parent=5 // pred_region
        %s346 = ssub.s32 %s28, 1
        // Predicated region
        $region13: #{tpu_custom_call.1} parent=11 // pred_check
          %p347 = pneg %p75
        $region14: #{tpu_custom_call.1} parent=11 // pred_check_branch
          %349 = sbr.rel (%p347) target = $region16
        $region15: #{tpu_custom_call.1} parent=11 // pred_region
          %s351 = ssub.s32 2048, 2048
          %352 = vsyncadd [#allocation6], %s351
          %s353 = sshll.u32 [#allocation5], 4
          %s354 = int_to_ptr.vmem [resolvable:$true] %s353
          %359 = dma.hbm_to_vmem [thread:$0]  %s1, 2048, %s354, [#allocation6], 128, 128, 8
        $region16: #{tpu_custom_call.1} parent=11 // pred_fallthru
          _
        // Predicated region
        $region17: #{tpu_custom_call.1} parent=11 // pred_check
          %p360 = pneg %p96
        $region18: #{tpu_custom_call.1} parent=11 // pred_check_branch
          %362 = sbr.rel (%p360) target = $region20
        $region19: #{tpu_custom_call.1} parent=11 // pred_region
          _
        $region20: #{tpu_custom_call.1} parent=11 // pred_fallthru
          _
        // Predicated region
        $region21: #{tpu_custom_call.1} parent=11 // pred_check
          %p363 = pneg %p117
        $region22: #{tpu_custom_call.1} parent=11 // pred_check_branch
          %365 = sbr.rel (%p363) target = $region24
        $region23: #{tpu_custom_call.1} parent=11 // pred_region
          %s367 = ssub.s32 2048, 2048
          %368 = vsyncadd [#allocation6], %s367
          %s369 = sshll.u32 [#allocation7], 4
          %s370 = int_to_ptr.vmem [resolvable:$true] %s369
          %375 = dma.hbm_to_vmem [thread:$0]  %s3, 2048, %s370, [#allocation6], 128, 128, 8
        $region24: #{tpu_custom_call.1} parent=11 // pred_fallthru
          _
        // Predicated region
        $region25: #{tpu_custom_call.1} parent=11 // pred_check
          %p376 = pneg %p138
        $region26: #{tpu_custom_call.1} parent=11 // pred_check_branch
          %378 = sbr.rel (%p376) target = $region28
        $region27: #{tpu_custom_call.1} parent=11 // pred_region
          _
        $region28: #{tpu_custom_call.1} parent=11 // pred_fallthru
          _
        // Predicated region
        $region29: #{tpu_custom_call.1} parent=11 // pred_check
          %p379 = pneg %p159
        $region30: #{tpu_custom_call.1} parent=11 // pred_check_branch
          %381 = sbr.rel (%p379) target = $region32
        $region31: #{tpu_custom_call.1} parent=11 // pred_region
          %s383 = ssub.s32 2048, 2048
          %384 = vsyncadd [#allocation9], %s383
          %s385 = sshll.u32 [#allocation8], 4
          %s386 = int_to_ptr.vmem [resolvable:$true] %s385
          %391 = dma.hbm_to_vmem [thread:$0]  %s5, 2048, %s386, [#allocation9], 128, 128, 8
        $region32: #{tpu_custom_call.1} parent=11 // pred_fallthru
          _
        // Predicated region
        $region33: #{tpu_custom_call.1} parent=11 // pred_check
          %p392 = pneg %p180
        $region34: #{tpu_custom_call.1} parent=11 // pred_check_branch
          %394 = sbr.rel (%p392) target = $region36
        $region35: #{tpu_custom_call.1} parent=11 // pred_region
          _
        $region36: #{tpu_custom_call.1} parent=11 // pred_fallthru
          _
        // Predicated region
        $region37: #{tpu_custom_call.1} parent=11 // pred_check
          %p395 = pneg %p201
        $region38: #{tpu_custom_call.1} parent=11 // pred_check_branch
          %397 = sbr.rel (%p395) target = $region40
        $region39: #{tpu_custom_call.1} parent=11 // pred_region
          %s399 = ssub.s32 2048, 2048
          %400 = vsyncadd [#allocation9], %s399
          %s401 = sshll.u32 [#allocation10], 4
          %s402 = int_to_ptr.vmem [resolvable:$true] %s401
          %407 = dma.hbm_to_vmem [thread:$0]  %s7, 2048, %s402, [#allocation9], 128, 128, 8
        $region40: #{tpu_custom_call.1} parent=11 // pred_fallthru
          _
        // Predicated region
        $region41: #{tpu_custom_call.1} parent=11 // pred_check
          %p408 = pneg %p222
        $region42: #{tpu_custom_call.1} parent=11 // pred_check_branch
          %410 = sbr.rel (%p408) target = $region44
        $region43: #{tpu_custom_call.1} parent=11 // pred_region
          _
        $region44: #{tpu_custom_call.1} parent=11 // pred_fallthru
          _
        // Predicated region
        $region45: #{tpu_custom_call.1} parent=11 // pred_check
          %p411 = pneg %p243
        $region46: #{tpu_custom_call.1} parent=11 // pred_check_branch
          %413 = sbr.rel (%p411) target = $region48
        $region47: #{tpu_custom_call.1} parent=11 // pred_region
          %s415 = ssub.s32 2048, 2048
          %416 = vsyncadd [#allocation12], %s415
          %s417 = sshll.u32 [#allocation11], 4
          %s418 = int_to_ptr.vmem [resolvable:$true] %s417
          %423 = dma.hbm_to_vmem [thread:$0]  %s9, 2048, %s418, [#allocation12], 128, 128, 8
        $region48: #{tpu_custom_call.1} parent=11 // pred_fallthru
          _
        // Predicated region
        $region49: #{tpu_custom_call.1} parent=11 // pred_check
          %p424 = pneg %p264
        $region50: #{tpu_custom_call.1} parent=11 // pred_check_branch
          %426 = sbr.rel (%p424) target = $region52
        $region51: #{tpu_custom_call.1} parent=11 // pred_region
          _
        $region52: #{tpu_custom_call.1} parent=11 // pred_fallthru
          _
        // Predicated region
        $region53: #{tpu_custom_call.1} parent=11 // pred_check
          %p427 = pneg %p285
        $region54: #{tpu_custom_call.1} parent=11 // pred_check_branch
          %429 = sbr.rel (%p427) target = $region56
        $region55: #{tpu_custom_call.1} parent=11 // pred_region
          %s431 = ssub.s32 2048, 2048
          %432 = vsyncadd [#allocation12], %s431
          %s433 = sshll.u32 [#allocation13], 4
          %s434 = int_to_ptr.vmem [resolvable:$true] %s433
          %439 = dma.hbm_to_vmem [thread:$0]  %s11, 2048, %s434, [#allocation12], 128, 128, 8
        $region56: #{tpu_custom_call.1} parent=11 // pred_fallthru
          _
        // Predicated region
        $region57: #{tpu_custom_call.1} parent=11 // pred_check
          %p440 = pneg %p306
        $region58: #{tpu_custom_call.1} parent=11 // pred_check_branch
          %442 = sbr.rel (%p440) target = $region60
        $region59: #{tpu_custom_call.1} parent=11 // pred_region
          _
        $region60: #{tpu_custom_call.1} parent=11 // pred_fallthru
          _
      $region12: #{tpu_custom_call.1} parent=5 // pred_fallthru
        _
      %p443 = scmp.lt.s32.totalorder %s28, 2
      // Predicated region
      $region61: #{tpu_custom_call.1} parent=5 // pred_check
        %p444 = pneg %p443
      $region62: #{tpu_custom_call.1} parent=5 // pred_check_branch
        %446 = sbr.rel (%p444) target = $region64
      $region63: #{tpu_custom_call.1} parent=5 // pred_region
        // Predicated region
        $region65: #{tpu_custom_call.1} parent=63 // pred_check
          %p447 = pneg %p48
        $region66: #{tpu_custom_call.1} parent=63 // pred_check_branch
          %449 = sbr.rel (%p447) target = $region68
        $region67: #{tpu_custom_call.1} parent=63 // pred_region
          %s450 = sand.u32 %s38, 1
          %s451 = scalar_lea.sflag [#allocation3], %s450
          %s452 = sand.u32 %s38, 1
          %s453 = smul.addr %s452, 256
          %s454 = scalar_lea.vmem [#allocation2], %s453
          %s455 = smul.u32 32, %s28
          %s457 = ssub.s32 4096, 4096
          %458 = vsyncadd %s451, %s457
          %s459 = smul.addr %s455, 128
          %s460 = scalar_lea.hbm %s0, %s459
          %s461 = sshll.u32 %s454, 4
          %s462 = int_to_ptr.vmem [resolvable:$true] %s461
          %467 = dma.hbm_to_vmem [thread:$0]  %s460, 4096, %s462, %s451, 128, 128, 8
        $region68: #{tpu_custom_call.1} parent=63 // pred_fallthru
          _
      $region64: #{tpu_custom_call.1} parent=5 // pred_fallthru
        _
      %p468 = scmp.le.s32.totalorder 1, %s28
      %p469 = scmp.lt.s32.totalorder %s28, 3
      %p470 = pnand %p468, %p469
      %p471 = pneg %p470
      // Predicated region
      $region69: #{tpu_custom_call.1} parent=5 // pred_check
        _
      $region70: #{tpu_custom_call.1} parent=5 // pred_check_branch
        %473 = sbr.rel (%p470) target = $region72
      $region71: #{tpu_custom_call.1} parent=5 // pred_region
        %s474 = ssub.s32 %s28, 1
        %s475 = sand.u32 %s41, 1
        %s476 = scalar_lea.sflag [#allocation3], %s475
        %s477 = sand.u32 %s41, 1
        %s478 = smul.addr %s477, 256
        %s479 = scalar_lea.vmem [#allocation2], %s478
        // Predicated region
        $region73: #{tpu_custom_call.1} parent=71 // pred_check
          %p480 = pneg %p54
        $region74: #{tpu_custom_call.1} parent=71 // pred_check_branch
          %482 = sbr.rel (%p480) target = $region76
        $region75: #{tpu_custom_call.1} parent=71 // pred_region
          %483 = dma.done %s476, 4096
        $region76: #{tpu_custom_call.1} parent=71 // pred_fallthru
          _
        // Predicated region
        $region77: #{tpu_custom_call.1} parent=71 // pred_check
          %p484 = pneg %p75
        $region78: #{tpu_custom_call.1} parent=71 // pred_check_branch
          %486 = sbr.rel (%p484) target = $region80
        $region79: #{tpu_custom_call.1} parent=71 // pred_region
          %487 = dma.done [#allocation6], 2048
        $region80: #{tpu_custom_call.1} parent=71 // pred_fallthru
          _
        // Predicated region
        $region81: #{tpu_custom_call.1} parent=71 // pred_check
          %p488 = pneg %p117
        $region82: #{tpu_custom_call.1} parent=71 // pred_check_branch
          %490 = sbr.rel (%p488) target = $region84
        $region83: #{tpu_custom_call.1} parent=71 // pred_region
          %491 = dma.done [#allocation6], 2048
        $region84: #{tpu_custom_call.1} parent=71 // pred_fallthru
          _
        // Predicated region
        $region85: #{tpu_custom_call.1} parent=71 // pred_check
          %p492 = pneg %p159
        $region86: #{tpu_custom_call.1} parent=71 // pred_check_branch
          %494 = sbr.rel (%p492) target = $region88
        $region87: #{tpu_custom_call.1} parent=71 // pred_region
          %495 = dma.done [#allocation9], 2048
        $region88: #{tpu_custom_call.1} parent=71 // pred_fallthru
          _
        // Predicated region
        $region89: #{tpu_custom_call.1} parent=71 // pred_check
          %p496 = pneg %p201
        $region90: #{tpu_custom_call.1} parent=71 // pred_check_branch
          %498 = sbr.rel (%p496) target = $region92
        $region91: #{tpu_custom_call.1} parent=71 // pred_region
          %499 = dma.done [#allocation9], 2048
        $region92: #{tpu_custom_call.1} parent=71 // pred_fallthru
          _
        // Predicated region
        $region93: #{tpu_custom_call.1} parent=71 // pred_check
          %p500 = pneg %p243
        $region94: #{tpu_custom_call.1} parent=71 // pred_check_branch
          %502 = sbr.rel (%p500) target = $region96
        $region95: #{tpu_custom_call.1} parent=71 // pred_region
          %503 = dma.done [#allocation12], 2048
        $region96: #{tpu_custom_call.1} parent=71 // pred_fallthru
          _
        // Predicated region
        $region97: #{tpu_custom_call.1} parent=71 // pred_check
          %p504 = pneg %p285
        $region98: #{tpu_custom_call.1} parent=71 // pred_check_branch
          %506 = sbr.rel (%p504) target = $region100
        $region99: #{tpu_custom_call.1} parent=71 // pred_region
          %507 = dma.done [#allocation12], 2048
        $region100: #{tpu_custom_call.1} parent=71 // pred_fallthru
          _
        %s508 = sand.u32 %s41, 1
        %s509 = scalar_lea.sflag [#allocation3], %s508
        %s510 = sand.u32 %s41, 1
        %s511 = smul.addr %s510, 256
        %s512 = scalar_lea.vmem [#allocation2], %s511
        %p513 = pneg %p54
        %p514 = pneg %p51
        %p515 = pneg %p75
        %p516 = pneg %p72
        %p517 = pneg %p96
        %p518 = pneg %p93
        %p519 = pneg %p117
        %p520 = pneg %p114
        %p521 = pneg %p138
        %p522 = pneg %p135
        %p523 = pneg %p159
        %p524 = pneg %p156
        %p525 = pneg %p180
        %p526 = pneg %p177
        %p527 = pneg %p201
        %p528 = pneg %p198
        %p529 = pneg %p222
        %p530 = pneg %p219
        %p531 = pneg %p243
        %p532 = pneg %p240
        %p533 = pneg %p264
        %p534 = pneg %p261
        %p535 = pneg %p285
        %p536 = pneg %p282
        %p537 = pneg %p306
        %p538 = pneg %p303
        %p539 = pneg %p332
        %p540 = pneg %p329
        %s541 = sand.u32 %s319, 1
        %s542 = scalar_lea.sflag [#allocation4], %s541
        %s543 = sand.u32 %s319, 1
        %s544 = smul.addr %s543, 256
        %s545 = scalar_lea.vmem [#allocation14], %s544
        %s546 = smul.u32 32, %s33
        %s547 = smul.u32 32, %s33
        %v548 = vld [vmem:[%s479] sm:$0xff]
        %v549 = vld [vmem:[%s479 + $0x8] sm:$0xff]
        %v550 = vld [vmem:[%s479 + $0x10] sm:$0xff]
        %v551 = vld [vmem:[%s479 + $0x18] sm:$0xff]
        %v552 = vld [vmem:[%s479 + $0x20] sm:$0xff]
        %v553 = vld [vmem:[%s479 + $0x28] sm:$0xff]
        %v554 = vld [vmem:[%s479 + $0x30] sm:$0xff]
        %v555 = vld [vmem:[%s479 + $0x38] sm:$0xff]
        %v556 = vld [vmem:[%s479 + $0x40] sm:$0xff]
        %v557 = vld [vmem:[%s479 + $0x48] sm:$0xff]
        %v558 = vld [vmem:[%s479 + $0x50] sm:$0xff]
        %v559 = vld [vmem:[%s479 + $0x58] sm:$0xff]
        %v560 = vld [vmem:[%s479 + $0x60] sm:$0xff]
        %v561 = vld [vmem:[%s479 + $0x68] sm:$0xff]
        %v562 = vld [vmem:[%s479 + $0x70] sm:$0xff]
        %v563 = vld [vmem:[%s479 + $0x78] sm:$0xff]
        %v564 = vld [vmem:[%s479 + $0x80] sm:$0xff]
        %v565 = vld [vmem:[%s479 + $0x88] sm:$0xff]
        %v566 = vld [vmem:[%s479 + $0x90] sm:$0xff]
        %v567 = vld [vmem:[%s479 + $0x98] sm:$0xff]
        %v568 = vld [vmem:[%s479 + $0xa0] sm:$0xff]
        %v569 = vld [vmem:[%s479 + $0xa8] sm:$0xff]
        %v570 = vld [vmem:[%s479 + $0xb0] sm:$0xff]
        %v571 = vld [vmem:[%s479 + $0xb8] sm:$0xff]
        %v572 = vld [vmem:[%s479 + $0xc0] sm:$0xff]
        %v573 = vld [vmem:[%s479 + $0xc8] sm:$0xff]
        %v574 = vld [vmem:[%s479 + $0xd0] sm:$0xff]
        %v575 = vld [vmem:[%s479 + $0xd8] sm:$0xff]
        %v576 = vld [vmem:[%s479 + $0xe0] sm:$0xff]
        %v577 = vld [vmem:[%s479 + $0xe8] sm:$0xff]
        %v578 = vld [vmem:[%s479 + $0xf0] sm:$0xff]
        %v579 = vld [vmem:[%s479 + $0xf8] sm:$0xff]
        %v580 = vld [vmem:[#allocation5] sm:$0xff]
        %v581 = vld [vmem:[#allocation5 + $0x8] sm:$0xff]
        %v582 = vld [vmem:[#allocation5 + $0x10] sm:$0xff]
        %v583 = vld [vmem:[#allocation5 + $0x18] sm:$0xff]
        %v584 = vld [vmem:[#allocation5 + $0x20] sm:$0xff]
        %v585 = vld [vmem:[#allocation5 + $0x28] sm:$0xff]
        %v586 = vld [vmem:[#allocation5 + $0x30] sm:$0xff]
        %v587 = vld [vmem:[#allocation5 + $0x38] sm:$0xff]
        %v588 = vld [vmem:[#allocation5 + $0x40] sm:$0xff]
        %v589 = vld [vmem:[#allocation5 + $0x48] sm:$0xff]
        %v590 = vld [vmem:[#allocation5 + $0x50] sm:$0xff]
        %v591 = vld [vmem:[#allocation5 + $0x58] sm:$0xff]
        %v592 = vld [vmem:[#allocation5 + $0x60] sm:$0xff]
        %v593 = vld [vmem:[#allocation5 + $0x68] sm:$0xff]
        %v594 = vld [vmem:[#allocation5 + $0x70] sm:$0xff]
        %v595 = vld [vmem:[#allocation5 + $0x78] sm:$0xff]
        %v596 = vld [vmem:[%s2] sm:$0x1]
        %v598 = vlaneseq
        %v599 = vshrl.u32 %v598, 7
        %v600 = vsub.s32 0, %v599
        %v601 = vrot.slane %v596, %v600
        %603 = vmatprep.subr.mxu0 0.0
        %604 = vmatpush1.msra.mxu0 %v595
        %605 = vmatprep.subr.mxu0 0.0
        %606 = vmatpush1.msra.mxu0 %v594
        %607 = vmatprep.subr.mxu0 0.0
        %608 = vmatpush1.msra.mxu0 %v593
        %609 = vmatprep.subr.mxu0 0.0
        %610 = vmatpush1.msra.mxu0 %v592
        %611 = vmatprep.subr.mxu0 0.0
        %612 = vmatpush1.msra.mxu0 %v591
        %613 = vmatprep.subr.mxu0 0.0
        %614 = vmatpush1.msra.mxu0 %v590
        %615 = vmatprep.subr.mxu0 0.0
        %616 = vmatpush1.msra.mxu0 %v589
        %617 = vmatprep.subr.mxu0 0.0
        %618 = vmatpush1.msra.mxu0 %v588
        %619 = vmatprep.subr.mxu0 0.0
        %620 = vmatpush1.msra.mxu0 %v587
        %621 = vmatprep.subr.mxu0 0.0
        %622 = vmatpush1.msra.mxu0 %v586
        %623 = vmatprep.subr.mxu0 0.0
        %624 = vmatpush1.msra.mxu0 %v585
        %625 = vmatprep.subr.mxu0 0.0
        %626 = vmatpush1.msra.mxu0 %v584
        %627 = vmatprep.subr.mxu0 0.0
        %628 = vmatpush1.msra.mxu0 %v583
        %629 = vmatprep.subr.mxu0 0.0
        %630 = vmatpush1.msra.mxu0 %v582
        %631 = vmatprep.subr.mxu0 0.0
        %632 = vmatpush1.msra.mxu0 %v581
        %633 = vmatprep.subr.mxu0 0.0
        %634 = vmatpush1.msra.mxu0 %v580
        %635 = vmatprep.subr.mxu0 0.0
        %636 = vmatpush2.msra.mxu0 0.0
        %637 = vmatprep.subr.mxu0 0.0
        %638 = vmatpush2.msra.mxu0 0.0
        %639 = vmatprep.subr.mxu0 0.0
        %640 = vmatpush2.msra.mxu0 0.0
        %641 = vmatprep.subr.mxu0 0.0
        %642 = vmatpush2.msra.mxu0 0.0
        %643 = vmatprep.subr.mxu0 0.0
        %644 = vmatpush2.msra.mxu0 0.0
        %645 = vmatprep.subr.mxu0 0.0
        %646 = vmatpush2.msra.mxu0 0.0
        %647 = vmatprep.subr.mxu0 0.0
        %648 = vmatpush2.msra.mxu0 0.0
        %649 = vmatprep.subr.mxu0 0.0
        %650 = vmatpush2.msra.mxu0 0.0
        %651 = vmatprep.subr.mxu0 0.0
        %652 = vmatpush2.msra.mxu0 0.0
        %653 = vmatprep.subr.mxu0 0.0
        %654 = vmatpush2.msra.mxu0 0.0
        %655 = vmatprep.subr.mxu0 0.0
        %656 = vmatpush2.msra.mxu0 0.0
        %657 = vmatprep.subr.mxu0 0.0
        %658 = vmatpush2.msra.mxu0 0.0
        %659 = vmatprep.subr.mxu0 0.0
        %660 = vmatpush2.msra.mxu0 0.0
        %661 = vmatprep.subr.mxu0 0.0
        %662 = vmatpush2.msra.mxu0 0.0
        %663 = vmatprep.subr.mxu0 0.0
        %664 = vmatpush2.msra.mxu0 0.0
        %665 = vmatprep.subr.mxu0 0.0
        %666 = vmatpush2.msra.mxu0 0.0
        %667 = vmatprep.mubr.f32.mxu0 0.0
        %668 = vmatmul.mubr.f32.gmra.mxu0 %v548
        %v669 = vpop.f32.mrf.mxu0
        %v670 = vadd.f32 %v601, %v669
        %v671 = vpop.f32.mrf.mxu0
        %672 = vmatprep.mubr.f32.mxu0 0.0
        %673 = vmatmul.mubr.f32.gmra.mxu0 %v549
        %v674 = vpop.f32.mrf.mxu0
        %v675 = vadd.f32 %v601, %v674
        %v676 = vpop.f32.mrf.mxu0
        %677 = vmatprep.mubr.f32.mxu0 0.0
        %678 = vmatmul.mubr.f32.gmra.mxu0 %v550
        %v679 = vpop.f32.mrf.mxu0
        %v680 = vadd.f32 %v601, %v679
        %v681 = vpop.f32.mrf.mxu0
        %682 = vmatprep.mubr.f32.mxu0 0.0
        %683 = vmatmul.mubr.f32.gmra.mxu0 %v551
        %v684 = vpop.f32.mrf.mxu0
        %v685 = vadd.f32 %v601, %v684
        %v686 = vpop.f32.mrf.mxu0
        %687 = vmatprep.mubr.f32.mxu0 0.0
        %688 = vmatmul.mubr.f32.gmra.mxu0 %v552
        %v689 = vpop.f32.mrf.mxu0
        %v690 = vadd.f32 %v601, %v689
        %v691 = vpop.f32.mrf.mxu0
        %692 = vmatprep.mubr.f32.mxu0 0.0
        %693 = vmatmul.mubr.f32.gmra.mxu0 %v553
        %v694 = vpop.f32.mrf.mxu0
        %v695 = vadd.f32 %v601, %v694
        %v696 = vpop.f32.mrf.mxu0
        %697 = vmatprep.mubr.f32.mxu0 0.0
        %698 = vmatmul.mubr.f32.gmra.mxu0 %v554
        %v699 = vpop.f32.mrf.mxu0
        %v700 = vadd.f32 %v601, %v699
        %v701 = vpop.f32.mrf.mxu0
        %702 = vmatprep.mubr.f32.mxu0 0.0
        %703 = vmatmul.mubr.f32.gmra.mxu0 %v555
        %v704 = vpop.f32.mrf.mxu0
        %v705 = vadd.f32 %v601, %v704
        %v706 = vpop.f32.mrf.mxu0
        %707 = vmatprep.mubr.f32.mxu0 0.0
        %708 = vmatmul.mubr.f32.gmra.mxu0 %v556
        %v709 = vpop.f32.mrf.mxu0
        %v710 = vadd.f32 %v601, %v709
        %v711 = vpop.f32.mrf.mxu0
        %712 = vmatprep.mubr.f32.mxu0 0.0
        %713 = vmatmul.mubr.f32.gmra.mxu0 %v557
        %v714 = vpop.f32.mrf.mxu0
        %v715 = vadd.f32 %v601, %v714
        %v716 = vpop.f32.mrf.mxu0
        %717 = vmatprep.mubr.f32.mxu0 0.0
        %718 = vmatmul.mubr.f32.gmra.mxu0 %v558
        %v719 = vpop.f32.mrf.mxu0
        %v720 = vadd.f32 %v601, %v719
        %v721 = vpop.f32.mrf.mxu0
        %722 = vmatprep.mubr.f32.mxu0 0.0
        %723 = vmatmul.mubr.f32.gmra.mxu0 %v559
        %v724 = vpop.f32.mrf.mxu0
        %v725 = vadd.f32 %v601, %v724
        %v726 = vpop.f32.mrf.mxu0
        %727 = vmatprep.mubr.f32.mxu0 0.0
        %728 = vmatmul.mubr.f32.gmra.mxu0 %v560
        %v729 = vpop.f32.mrf.mxu0
        %v730 = vadd.f32 %v601, %v729
        %v731 = vpop.f32.mrf.mxu0
        %732 = vmatprep.mubr.f32.mxu0 0.0
        %733 = vmatmul.mubr.f32.gmra.mxu0 %v561
        %v734 = vpop.f32.mrf.mxu0
        %v735 = vadd.f32 %v601, %v734
        %v736 = vpop.f32.mrf.mxu0
        %737 = vmatprep.mubr.f32.mxu0 0.0
        %738 = vmatmul.mubr.f32.gmra.mxu0 %v562
        %v739 = vpop.f32.mrf.mxu0
        %v740 = vadd.f32 %v601, %v739
        %v741 = vpop.f32.mrf.mxu0
        %742 = vmatprep.mubr.f32.mxu0 0.0
        %743 = vmatmul.mubr.f32.gmra.mxu0 %v563
        %v744 = vpop.f32.mrf.mxu0
        %v745 = vadd.f32 %v601, %v744
        %v746 = vpop.f32.mrf.mxu0
        %747 = vmatprep.mubr.f32.mxu0 0.0
        %748 = vmatmul.mubr.f32.gmra.mxu0 %v564
        %v749 = vpop.f32.mrf.mxu0
        %v750 = vadd.f32 %v601, %v749
        %v751 = vpop.f32.mrf.mxu0
        %752 = vmatprep.mubr.f32.mxu0 0.0
        %753 = vmatmul.mubr.f32.gmra.mxu0 %v565
        %v754 = vpop.f32.mrf.mxu0
        %v755 = vadd.f32 %v601, %v754
        %v756 = vpop.f32.mrf.mxu0
        %757 = vmatprep.mubr.f32.mxu0 0.0
        %758 = vmatmul.mubr.f32.gmra.mxu0 %v566
        %v759 = vpop.f32.mrf.mxu0
        %v760 = vadd.f32 %v601, %v759
        %v761 = vpop.f32.mrf.mxu0
        %762 = vmatprep.mubr.f32.mxu0 0.0
        %763 = vmatmul.mubr.f32.gmra.mxu0 %v567
        %v764 = vpop.f32.mrf.mxu0
        %v765 = vadd.f32 %v601, %v764
        %v766 = vpop.f32.mrf.mxu0
        %767 = vmatprep.mubr.f32.mxu0 0.0
        %768 = vmatmul.mubr.f32.gmra.mxu0 %v568
        %v769 = vpop.f32.mrf.mxu0
        %v770 = vadd.f32 %v601, %v769
        %v771 = vpop.f32.mrf.mxu0
        %772 = vmatprep.mubr.f32.mxu0 0.0
        %773 = vmatmul.mubr.f32.gmra.mxu0 %v569
        %v774 = vpop.f32.mrf.mxu0
        %v775 = vadd.f32 %v601, %v774
        %v776 = vpop.f32.mrf.mxu0
        %777 = vmatprep.mubr.f32.mxu0 0.0
        %778 = vmatmul.mubr.f32.gmra.mxu0 %v570
        %v779 = vpop.f32.mrf.mxu0
        %v780 = vadd.f32 %v601, %v779
        %v781 = vpop.f32.mrf.mxu0
        %782 = vmatprep.mubr.f32.mxu0 0.0
        %783 = vmatmul.mubr.f32.gmra.mxu0 %v571
        %v784 = vpop.f32.mrf.mxu0
        %v785 = vadd.f32 %v601, %v784
        %v786 = vpop.f32.mrf.mxu0
        %787 = vmatprep.mubr.f32.mxu0 0.0
        %788 = vmatmul.mubr.f32.gmra.mxu0 %v572
        %v789 = vpop.f32.mrf.mxu0
        %v790 = vadd.f32 %v601, %v789
        %v791 = vpop.f32.mrf.mxu0
        %792 = vmatprep.mubr.f32.mxu0 0.0
        %793 = vmatmul.mubr.f32.gmra.mxu0 %v573
        %v794 = vpop.f32.mrf.mxu0
        %v795 = vadd.f32 %v601, %v794
        %v796 = vpop.f32.mrf.mxu0
        %797 = vmatprep.mubr.f32.mxu0 0.0
        %798 = vmatmul.mubr.f32.gmra.mxu0 %v574
        %v799 = vpop.f32.mrf.mxu0
        %v800 = vadd.f32 %v601, %v799
        %v801 = vpop.f32.mrf.mxu0
        %802 = vmatprep.mubr.f32.mxu0 0.0
        %803 = vmatmul.mubr.f32.gmra.mxu0 %v575
        %v804 = vpop.f32.mrf.mxu0
        %v805 = vadd.f32 %v601, %v804
        %v806 = vpop.f32.mrf.mxu0
        %807 = vmatprep.mubr.f32.mxu0 0.0
        %808 = vmatmul.mubr.f32.gmra.mxu0 %v576
        %v809 = vpop.f32.mrf.mxu0
        %v810 = vadd.f32 %v601, %v809
        %v811 = vpop.f32.mrf.mxu0
        %812 = vmatprep.mubr.f32.mxu0 0.0
        %813 = vmatmul.mubr.f32.gmra.mxu0 %v577
        %v814 = vpop.f32.mrf.mxu0
        %v815 = vadd.f32 %v601, %v814
        %v816 = vpop.f32.mrf.mxu0
        %817 = vmatprep.mubr.f32.mxu0 0.0
        %818 = vmatmul.mubr.f32.gmra.mxu0 %v578
        %v819 = vpop.f32.mrf.mxu0
        %v820 = vadd.f32 %v601, %v819
        %v821 = vpop.f32.mrf.mxu0
        %822 = vmatprep.mubr.f32.mxu0 0.0
        %823 = vmatmul.mubr.f32.gmra.mxu0 %v579
        %v824 = vpop.f32.mrf.mxu0
        %v825 = vadd.f32 %v601, %v824
        %v826 = vpop.f32.mrf.mxu0
        %827 = vdwg.mxu0
        %v828 = vmax.f32 %v670, 0.0
        %v829 = vmax.f32 %v675, 0.0
        %v830 = vmax.f32 %v680, 0.0
        %v831 = vmax.f32 %v685, 0.0
        %v832 = vmax.f32 %v690, 0.0
        %v833 = vmax.f32 %v695, 0.0
        %v834 = vmax.f32 %v700, 0.0
        %v835 = vmax.f32 %v705, 0.0
        %v836 = vmax.f32 %v710, 0.0
        %v837 = vmax.f32 %v715, 0.0
        %v838 = vmax.f32 %v720, 0.0
        %v839 = vmax.f32 %v725, 0.0
        %v840 = vmax.f32 %v730, 0.0
        %v841 = vmax.f32 %v735, 0.0
        %v842 = vmax.f32 %v740, 0.0
        %v843 = vmax.f32 %v745, 0.0
        %v844 = vmax.f32 %v750, 0.0
        %v845 = vmax.f32 %v755, 0.0
        %v846 = vmax.f32 %v760, 0.0
        %v847 = vmax.f32 %v765, 0.0
        %v848 = vmax.f32 %v770, 0.0
        %v849 = vmax.f32 %v775, 0.0
        %v850 = vmax.f32 %v780, 0.0
        %v851 = vmax.f32 %v785, 0.0
        %v852 = vmax.f32 %v790, 0.0
        %v853 = vmax.f32 %v795, 0.0
        %v854 = vmax.f32 %v800, 0.0
        %v855 = vmax.f32 %v805, 0.0
        %v856 = vmax.f32 %v810, 0.0
        %v857 = vmax.f32 %v815, 0.0
        %v858 = vmax.f32 %v820, 0.0
        %v859 = vmax.f32 %v825, 0.0
        %v860 = vld [vmem:[#allocation7] sm:$0xff]
        %v861 = vld [vmem:[#allocation7 + $0x8] sm:$0xff]
        %v862 = vld [vmem:[#allocation7 + $0x10] sm:$0xff]
        %v863 = vld [vmem:[#allocation7 + $0x18] sm:$0xff]
        %v864 = vld [vmem:[#allocation7 + $0x20] sm:$0xff]
        %v865 = vld [vmem:[#allocation7 + $0x28] sm:$0xff]
        %v866 = vld [vmem:[#allocation7 + $0x30] sm:$0xff]
        %v867 = vld [vmem:[#allocation7 + $0x38] sm:$0xff]
        %v868 = vld [vmem:[#allocation7 + $0x40] sm:$0xff]
        %v869 = vld [vmem:[#allocation7 + $0x48] sm:$0xff]
        %v870 = vld [vmem:[#allocation7 + $0x50] sm:$0xff]
        %v871 = vld [vmem:[#allocation7 + $0x58] sm:$0xff]
        %v872 = vld [vmem:[#allocation7 + $0x60] sm:$0xff]
        %v873 = vld [vmem:[#allocation7 + $0x68] sm:$0xff]
        %v874 = vld [vmem:[#allocation7 + $0x70] sm:$0xff]
        %v875 = vld [vmem:[#allocation7 + $0x78] sm:$0xff]
        %v876 = vld [vmem:[%s4] sm:$0x1]
        %v878 = vlaneseq
        %v879 = vshrl.u32 %v878, 7
        %v880 = vsub.s32 0, %v879
        %v881 = vrot.slane %v876, %v880
        %883 = vmatprep.subr.mxu0 0.0
        %884 = vmatpush1.msra.mxu0 %v875
        %885 = vmatprep.subr.mxu0 0.0
        %886 = vmatpush1.msra.mxu0 %v874
        %887 = vmatprep.subr.mxu0 0.0
        %888 = vmatpush1.msra.mxu0 %v873
        %889 = vmatprep.subr.mxu0 0.0
        %890 = vmatpush1.msra.mxu0 %v872
        %891 = vmatprep.subr.mxu0 0.0
        %892 = vmatpush1.msra.mxu0 %v871
        %893 = vmatprep.subr.mxu0 0.0
        %894 = vmatpush1.msra.mxu0 %v870
        %895 = vmatprep.subr.mxu0 0.0
        %896 = vmatpush1.msra.mxu0 %v869
        %897 = vmatprep.subr.mxu0 0.0
        %898 = vmatpush1.msra.mxu0 %v868
        %899 = vmatprep.subr.mxu0 0.0
        %900 = vmatpush1.msra.mxu0 %v867
        %901 = vmatprep.subr.mxu0 0.0
        %902 = vmatpush1.msra.mxu0 %v866
        %903 = vmatprep.subr.mxu0 0.0
        %904 = vmatpush1.msra.mxu0 %v865
        %905 = vmatprep.subr.mxu0 0.0
        %906 = vmatpush1.msra.mxu0 %v864
        %907 = vmatprep.subr.mxu0 0.0
        %908 = vmatpush1.msra.mxu0 %v863
        %909 = vmatprep.subr.mxu0 0.0
        %910 = vmatpush1.msra.mxu0 %v862
        %911 = vmatprep.subr.mxu0 0.0
        %912 = vmatpush1.msra.mxu0 %v861
        %913 = vmatprep.subr.mxu0 0.0
        %914 = vmatpush1.msra.mxu0 %v860
        %915 = vmatprep.subr.mxu0 0.0
        %916 = vmatpush2.msra.mxu0 0.0
        %917 = vmatprep.subr.mxu0 0.0
        %918 = vmatpush2.msra.mxu0 0.0
        %919 = vmatprep.subr.mxu0 0.0
        %920 = vmatpush2.msra.mxu0 0.0
        %921 = vmatprep.subr.mxu0 0.0
        %922 = vmatpush2.msra.mxu0 0.0
        %923 = vmatprep.subr.mxu0 0.0
        %924 = vmatpush2.msra.mxu0 0.0
        %925 = vmatprep.subr.mxu0 0.0
        %926 = vmatpush2.msra.mxu0 0.0
        %927 = vmatprep.subr.mxu0 0.0
        %928 = vmatpush2.msra.mxu0 0.0
        %929 = vmatprep.subr.mxu0 0.0
        %930 = vmatpush2.msra.mxu0 0.0
        %931 = vmatprep.subr.mxu0 0.0
        %932 = vmatpush2.msra.mxu0 0.0
        %933 = vmatprep.subr.mxu0 0.0
        %934 = vmatpush2.msra.mxu0 0.0
        %935 = vmatprep.subr.mxu0 0.0
        %936 = vmatpush2.msra.mxu0 0.0
        %937 = vmatprep.subr.mxu0 0.0
        %938 = vmatpush2.msra.mxu0 0.0
        %939 = vmatprep.subr.mxu0 0.0
        %940 = vmatpush2.msra.mxu0 0.0
        %941 = vmatprep.subr.mxu0 0.0
        %942 = vmatpush2.msra.mxu0 0.0
        %943 = vmatprep.subr.mxu0 0.0
        %944 = vmatpush2.msra.mxu0 0.0
        %945 = vmatprep.subr.mxu0 0.0
        %946 = vmatpush2.msra.mxu0 0.0
        %947 = vmatprep.mubr.f32.mxu0 0.0
        %948 = vmatmul.mubr.f32.gmra.mxu0 %v828
        %v949 = vpop.f32.mrf.mxu0
        %v950 = vadd.f32 %v881, %v949
        %v951 = vpop.f32.mrf.mxu0
        %952 = vmatprep.mubr.f32.mxu0 0.0
        %953 = vmatmul.mubr.f32.gmra.mxu0 %v829
        %v954 = vpop.f32.mrf.mxu0
        %v955 = vadd.f32 %v881, %v954
        %v956 = vpop.f32.mrf.mxu0
        %957 = vmatprep.mubr.f32.mxu0 0.0
        %958 = vmatmul.mubr.f32.gmra.mxu0 %v830
        %v959 = vpop.f32.mrf.mxu0
        %v960 = vadd.f32 %v881, %v959
        %v961 = vpop.f32.mrf.mxu0
        %962 = vmatprep.mubr.f32.mxu0 0.0
        %963 = vmatmul.mubr.f32.gmra.mxu0 %v831
        %v964 = vpop.f32.mrf.mxu0
        %v965 = vadd.f32 %v881, %v964
        %v966 = vpop.f32.mrf.mxu0
        %967 = vmatprep.mubr.f32.mxu0 0.0
        %968 = vmatmul.mubr.f32.gmra.mxu0 %v832
        %v969 = vpop.f32.mrf.mxu0
        %v970 = vadd.f32 %v881, %v969
        %v971 = vpop.f32.mrf.mxu0
        %972 = vmatprep.mubr.f32.mxu0 0.0
        %973 = vmatmul.mubr.f32.gmra.mxu0 %v833
        %v974 = vpop.f32.mrf.mxu0
        %v975 = vadd.f32 %v881, %v974
        %v976 = vpop.f32.mrf.mxu0
        %977 = vmatprep.mubr.f32.mxu0 0.0
        %978 = vmatmul.mubr.f32.gmra.mxu0 %v834
        %v979 = vpop.f32.mrf.mxu0
        %v980 = vadd.f32 %v881, %v979
        %v981 = vpop.f32.mrf.mxu0
        %982 = vmatprep.mubr.f32.mxu0 0.0
        %983 = vmatmul.mubr.f32.gmra.mxu0 %v835
        %v984 = vpop.f32.mrf.mxu0
        %v985 = vadd.f32 %v881, %v984
        %v986 = vpop.f32.mrf.mxu0
        %987 = vmatprep.mubr.f32.mxu0 0.0
        %988 = vmatmul.mubr.f32.gmra.mxu0 %v836
        %v989 = vpop.f32.mrf.mxu0
        %v990 = vadd.f32 %v881, %v989
        %v991 = vpop.f32.mrf.mxu0
        %992 = vmatprep.mubr.f32.mxu0 0.0
        %993 = vmatmul.mubr.f32.gmra.mxu0 %v837
        %v994 = vpop.f32.mrf.mxu0
        %v995 = vadd.f32 %v881, %v994
        %v996 = vpop.f32.mrf.mxu0
        %997 = vmatprep.mubr.f32.mxu0 0.0
        %998 = vmatmul.mubr.f32.gmra.mxu0 %v838
        %v999 = vpop.f32.mrf.mxu0
        %v1000 = vadd.f32 %v881, %v999
        %v1001 = vpop.f32.mrf.mxu0
        %1002 = vmatprep.mubr.f32.mxu0 0.0
        %1003 = vmatmul.mubr.f32.gmra.mxu0 %v839
        %v1004 = vpop.f32.mrf.mxu0
        %v1005 = vadd.f32 %v881, %v1004
        %v1006 = vpop.f32.mrf.mxu0
        %1007 = vmatprep.mubr.f32.mxu0 0.0
        %1008 = vmatmul.mubr.f32.gmra.mxu0 %v840
        %v1009 = vpop.f32.mrf.mxu0
        %v1010 = vadd.f32 %v881, %v1009
        %v1011 = vpop.f32.mrf.mxu0
        %1012 = vmatprep.mubr.f32.mxu0 0.0
        %1013 = vmatmul.mubr.f32.gmra.mxu0 %v841
        %v1014 = vpop.f32.mrf.mxu0
        %v1015 = vadd.f32 %v881, %v1014
        %v1016 = vpop.f32.mrf.mxu0
        %1017 = vmatprep.mubr.f32.mxu0 0.0
        %1018 = vmatmul.mubr.f32.gmra.mxu0 %v842
        %v1019 = vpop.f32.mrf.mxu0
        %v1020 = vadd.f32 %v881, %v1019
        %v1021 = vpop.f32.mrf.mxu0
        %1022 = vmatprep.mubr.f32.mxu0 0.0
        %1023 = vmatmul.mubr.f32.gmra.mxu0 %v843
        %v1024 = vpop.f32.mrf.mxu0
        %v1025 = vadd.f32 %v881, %v1024
        %v1026 = vpop.f32.mrf.mxu0
        %1027 = vmatprep.mubr.f32.mxu0 0.0
        %1028 = vmatmul.mubr.f32.gmra.mxu0 %v844
        %v1029 = vpop.f32.mrf.mxu0
        %v1030 = vadd.f32 %v881, %v1029
        %v1031 = vpop.f32.mrf.mxu0
        %1032 = vmatprep.mubr.f32.mxu0 0.0
        %1033 = vmatmul.mubr.f32.gmra.mxu0 %v845
        %v1034 = vpop.f32.mrf.mxu0
        %v1035 = vadd.f32 %v881, %v1034
        %v1036 = vpop.f32.mrf.mxu0
        %1037 = vmatprep.mubr.f32.mxu0 0.0
        %1038 = vmatmul.mubr.f32.gmra.mxu0 %v846
        %v1039 = vpop.f32.mrf.mxu0
        %v1040 = vadd.f32 %v881, %v1039
        %v1041 = vpop.f32.mrf.mxu0
        %1042 = vmatprep.mubr.f32.mxu0 0.0
        %1043 = vmatmul.mubr.f32.gmra.mxu0 %v847
        %v1044 = vpop.f32.mrf.mxu0
        %v1045 = vadd.f32 %v881, %v1044
        %v1046 = vpop.f32.mrf.mxu0
        %1047 = vmatprep.mubr.f32.mxu0 0.0
        %1048 = vmatmul.mubr.f32.gmra.mxu0 %v848
        %v1049 = vpop.f32.mrf.mxu0
        %v1050 = vadd.f32 %v881, %v1049
        %v1051 = vpop.f32.mrf.mxu0
        %1052 = vmatprep.mubr.f32.mxu0 0.0
        %1053 = vmatmul.mubr.f32.gmra.mxu0 %v849
        %v1054 = vpop.f32.mrf.mxu0
        %v1055 = vadd.f32 %v881, %v1054
        %v1056 = vpop.f32.mrf.mxu0
        %1057 = vmatprep.mubr.f32.mxu0 0.0
        %1058 = vmatmul.mubr.f32.gmra.mxu0 %v850
        %v1059 = vpop.f32.mrf.mxu0
        %v1060 = vadd.f32 %v881, %v1059
        %v1061 = vpop.f32.mrf.mxu0
        %1062 = vmatprep.mubr.f32.mxu0 0.0
        %1063 = vmatmul.mubr.f32.gmra.mxu0 %v851
        %v1064 = vpop.f32.mrf.mxu0
        %v1065 = vadd.f32 %v881, %v1064
        %v1066 = vpop.f32.mrf.mxu0
        %1067 = vmatprep.mubr.f32.mxu0 0.0
        %1068 = vmatmul.mubr.f32.gmra.mxu0 %v852
        %v1069 = vpop.f32.mrf.mxu0
        %v1070 = vadd.f32 %v881, %v1069
        %v1071 = vpop.f32.mrf.mxu0
        %1072 = vmatprep.mubr.f32.mxu0 0.0
        %1073 = vmatmul.mubr.f32.gmra.mxu0 %v853
        %v1074 = vpop.f32.mrf.mxu0
        %v1075 = vadd.f32 %v881, %v1074
        %v1076 = vpop.f32.mrf.mxu0
        %1077 = vmatprep.mubr.f32.mxu0 0.0
        %1078 = vmatmul.mubr.f32.gmra.mxu0 %v854
        %v1079 = vpop.f32.mrf.mxu0
        %v1080 = vadd.f32 %v881, %v1079
        %v1081 = vpop.f32.mrf.mxu0
        %1082 = vmatprep.mubr.f32.mxu0 0.0
        %1083 = vmatmul.mubr.f32.gmra.mxu0 %v855
        %v1084 = vpop.f32.mrf.mxu0
        %v1085 = vadd.f32 %v881, %v1084
        %v1086 = vpop.f32.mrf.mxu0
        %1087 = vmatprep.mubr.f32.mxu0 0.0
        %1088 = vmatmul.mubr.f32.gmra.mxu0 %v856
        %v1089 = vpop.f32.mrf.mxu0
        %v1090 = vadd.f32 %v881, %v1089
        %v1091 = vpop.f32.mrf.mxu0
        %1092 = vmatprep.mubr.f32.mxu0 0.0
        %1093 = vmatmul.mubr.f32.gmra.mxu0 %v857
        %v1094 = vpop.f32.mrf.mxu0
        %v1095 = vadd.f32 %v881, %v1094
        %v1096 = vpop.f32.mrf.mxu0
        %1097 = vmatprep.mubr.f32.mxu0 0.0
        %1098 = vmatmul.mubr.f32.gmra.mxu0 %v858
        %v1099 = vpop.f32.mrf.mxu0
        %v1100 = vadd.f32 %v881, %v1099
        %v1101 = vpop.f32.mrf.mxu0
        %1102 = vmatprep.mubr.f32.mxu0 0.0
        %1103 = vmatmul.mubr.f32.gmra.mxu0 %v859
        %v1104 = vpop.f32.mrf.mxu0
        %v1105 = vadd.f32 %v881, %v1104
        %v1106 = vpop.f32.mrf.mxu0
        %1107 = vdwg.mxu0
        %v1108 = vmax.f32 %v950, 0.0
        %v1109 = vmax.f32 %v955, 0.0
        %v1110 = vmax.f32 %v960, 0.0
        %v1111 = vmax.f32 %v965, 0.0
        %v1112 = vmax.f32 %v970, 0.0
        %v1113 = vmax.f32 %v975, 0.0
        %v1114 = vmax.f32 %v980, 0.0
        %v1115 = vmax.f32 %v985, 0.0
        %v1116 = vmax.f32 %v990, 0.0
        %v1117 = vmax.f32 %v995, 0.0
        %v1118 = vmax.f32 %v1000, 0.0
        %v1119 = vmax.f32 %v1005, 0.0
        %v1120 = vmax.f32 %v1010, 0.0
        %v1121 = vmax.f32 %v1015, 0.0
        %v1122 = vmax.f32 %v1020, 0.0
        %v1123 = vmax.f32 %v1025, 0.0
        %v1124 = vmax.f32 %v1030, 0.0
        %v1125 = vmax.f32 %v1035, 0.0
        %v1126 = vmax.f32 %v1040, 0.0
        %v1127 = vmax.f32 %v1045, 0.0
        %v1128 = vmax.f32 %v1050, 0.0
        %v1129 = vmax.f32 %v1055, 0.0
        %v1130 = vmax.f32 %v1060, 0.0
        %v1131 = vmax.f32 %v1065, 0.0
        %v1132 = vmax.f32 %v1070, 0.0
        %v1133 = vmax.f32 %v1075, 0.0
        %v1134 = vmax.f32 %v1080, 0.0
        %v1135 = vmax.f32 %v1085, 0.0
        %v1136 = vmax.f32 %v1090, 0.0
        %v1137 = vmax.f32 %v1095, 0.0
        %v1138 = vmax.f32 %v1100, 0.0
        %v1139 = vmax.f32 %v1105, 0.0
        %v1140 = vld [vmem:[#allocation8] sm:$0xff]
        %v1141 = vld [vmem:[#allocation8 + $0x8] sm:$0xff]
        %v1142 = vld [vmem:[#allocation8 + $0x10] sm:$0xff]
        %v1143 = vld [vmem:[#allocation8 + $0x18] sm:$0xff]
        %v1144 = vld [vmem:[#allocation8 + $0x20] sm:$0xff]
        %v1145 = vld [vmem:[#allocation8 + $0x28] sm:$0xff]
        %v1146 = vld [vmem:[#allocation8 + $0x30] sm:$0xff]
        %v1147 = vld [vmem:[#allocation8 + $0x38] sm:$0xff]
        %v1148 = vld [vmem:[#allocation8 + $0x40] sm:$0xff]
        %v1149 = vld [vmem:[#allocation8 + $0x48] sm:$0xff]
        %v1150 = vld [vmem:[#allocation8 + $0x50] sm:$0xff]
        %v1151 = vld [vmem:[#allocation8 + $0x58] sm:$0xff]
        %v1152 = vld [vmem:[#allocation8 + $0x60] sm:$0xff]
        %v1153 = vld [vmem:[#allocation8 + $0x68] sm:$0xff]
        %v1154 = vld [vmem:[#allocation8 + $0x70] sm:$0xff]
        %v1155 = vld [vmem:[#allocation8 + $0x78] sm:$0xff]
        %v1156 = vld [vmem:[%s6] sm:$0x1]
        %v1158 = vlaneseq
        %v1159 = vshrl.u32 %v1158, 7
        %v1160 = vsub.s32 0, %v1159
        %v1161 = vrot.slane %v1156, %v1160
        %1163 = vmatprep.subr.mxu0 0.0
        %1164 = vmatpush1.msra.mxu0 %v1155
        %1165 = vmatprep.subr.mxu0 0.0
        %1166 = vmatpush1.msra.mxu0 %v1154
        %1167 = vmatprep.subr.mxu0 0.0
        %1168 = vmatpush1.msra.mxu0 %v1153
        %1169 = vmatprep.subr.mxu0 0.0
        %1170 = vmatpush1.msra.mxu0 %v1152
        %1171 = vmatprep.subr.mxu0 0.0
        %1172 = vmatpush1.msra.mxu0 %v1151
        %1173 = vmatprep.subr.mxu0 0.0
        %1174 = vmatpush1.msra.mxu0 %v1150
        %1175 = vmatprep.subr.mxu0 0.0
        %1176 = vmatpush1.msra.mxu0 %v1149
        %1177 = vmatprep.subr.mxu0 0.0
        %1178 = vmatpush1.msra.mxu0 %v1148
        %1179 = vmatprep.subr.mxu0 0.0
        %1180 = vmatpush1.msra.mxu0 %v1147
        %1181 = vmatprep.subr.mxu0 0.0
        %1182 = vmatpush1.msra.mxu0 %v1146
        %1183 = vmatprep.subr.mxu0 0.0
        %1184 = vmatpush1.msra.mxu0 %v1145
        %1185 = vmatprep.subr.mxu0 0.0
        %1186 = vmatpush1.msra.mxu0 %v1144
        %1187 = vmatprep.subr.mxu0 0.0
        %1188 = vmatpush1.msra.mxu0 %v1143
        %1189 = vmatprep.subr.mxu0 0.0
        %1190 = vmatpush1.msra.mxu0 %v1142
        %1191 = vmatprep.subr.mxu0 0.0
        %1192 = vmatpush1.msra.mxu0 %v1141
        %1193 = vmatprep.subr.mxu0 0.0
        %1194 = vmatpush1.msra.mxu0 %v1140
        %1195 = vmatprep.subr.mxu0 0.0
        %1196 = vmatpush2.msra.mxu0 0.0
        %1197 = vmatprep.subr.mxu0 0.0
        %1198 = vmatpush2.msra.mxu0 0.0
        %1199 = vmatprep.subr.mxu0 0.0
        %1200 = vmatpush2.msra.mxu0 0.0
        %1201 = vmatprep.subr.mxu0 0.0
        %1202 = vmatpush2.msra.mxu0 0.0
        %1203 = vmatprep.subr.mxu0 0.0
        %1204 = vmatpush2.msra.mxu0 0.0
        %1205 = vmatprep.subr.mxu0 0.0
        %1206 = vmatpush2.msra.mxu0 0.0
        %1207 = vmatprep.subr.mxu0 0.0
        %1208 = vmatpush2.msra.mxu0 0.0
        %1209 = vmatprep.subr.mxu0 0.0
        %1210 = vmatpush2.msra.mxu0 0.0
        %1211 = vmatprep.subr.mxu0 0.0
        %1212 = vmatpush2.msra.mxu0 0.0
        %1213 = vmatprep.subr.mxu0 0.0
        %1214 = vmatpush2.msra.mxu0 0.0
        %1215 = vmatprep.subr.mxu0 0.0
        %1216 = vmatpush2.msra.mxu0 0.0
        %1217 = vmatprep.subr.mxu0 0.0
        %1218 = vmatpush2.msra.mxu0 0.0
        %1219 = vmatprep.subr.mxu0 0.0
        %1220 = vmatpush2.msra.mxu0 0.0
        %1221 = vmatprep.subr.mxu0 0.0
        %1222 = vmatpush2.msra.mxu0 0.0
        %1223 = vmatprep.subr.mxu0 0.0
        %1224 = vmatpush2.msra.mxu0 0.0
        %1225 = vmatprep.subr.mxu0 0.0
        %1226 = vmatpush2.msra.mxu0 0.0
        %1227 = vmatprep.mubr.f32.mxu0 0.0
        %1228 = vmatmul.mubr.f32.gmra.mxu0 %v1108
        %v1229 = vpop.f32.mrf.mxu0
        %v1230 = vadd.f32 %v1161, %v1229
        %v1231 = vpop.f32.mrf.mxu0
        %1232 = vmatprep.mubr.f32.mxu0 0.0
        %1233 = vmatmul.mubr.f32.gmra.mxu0 %v1109
        %v1234 = vpop.f32.mrf.mxu0
        %v1235 = vadd.f32 %v1161, %v1234
        %v1236 = vpop.f32.mrf.mxu0
        %1237 = vmatprep.mubr.f32.mxu0 0.0
        %1238 = vmatmul.mubr.f32.gmra.mxu0 %v1110
        %v1239 = vpop.f32.mrf.mxu0
        %v1240 = vadd.f32 %v1161, %v1239
        %v1241 = vpop.f32.mrf.mxu0
        %1242 = vmatprep.mubr.f32.mxu0 0.0
        %1243 = vmatmul.mubr.f32.gmra.mxu0 %v1111
        %v1244 = vpop.f32.mrf.mxu0
        %v1245 = vadd.f32 %v1161, %v1244
        %v1246 = vpop.f32.mrf.mxu0
        %1247 = vmatprep.mubr.f32.mxu0 0.0
        %1248 = vmatmul.mubr.f32.gmra.mxu0 %v1112
        %v1249 = vpop.f32.mrf.mxu0
        %v1250 = vadd.f32 %v1161, %v1249
        %v1251 = vpop.f32.mrf.mxu0
        %1252 = vmatprep.mubr.f32.mxu0 0.0
        %1253 = vmatmul.mubr.f32.gmra.mxu0 %v1113
        %v1254 = vpop.f32.mrf.mxu0
        %v1255 = vadd.f32 %v1161, %v1254
        %v1256 = vpop.f32.mrf.mxu0
        %1257 = vmatprep.mubr.f32.mxu0 0.0
        %1258 = vmatmul.mubr.f32.gmra.mxu0 %v1114
        %v1259 = vpop.f32.mrf.mxu0
        %v1260 = vadd.f32 %v1161, %v1259
        %v1261 = vpop.f32.mrf.mxu0
        %1262 = vmatprep.mubr.f32.mxu0 0.0
        %1263 = vmatmul.mubr.f32.gmra.mxu0 %v1115
        %v1264 = vpop.f32.mrf.mxu0
        %v1265 = vadd.f32 %v1161, %v1264
        %v1266 = vpop.f32.mrf.mxu0
        %1267 = vmatprep.mubr.f32.mxu0 0.0
        %1268 = vmatmul.mubr.f32.gmra.mxu0 %v1116
        %v1269 = vpop.f32.mrf.mxu0
        %v1270 = vadd.f32 %v1161, %v1269
        %v1271 = vpop.f32.mrf.mxu0
        %1272 = vmatprep.mubr.f32.mxu0 0.0
        %1273 = vmatmul.mubr.f32.gmra.mxu0 %v1117
        %v1274 = vpop.f32.mrf.mxu0
        %v1275 = vadd.f32 %v1161, %v1274
        %v1276 = vpop.f32.mrf.mxu0
        %1277 = vmatprep.mubr.f32.mxu0 0.0
        %1278 = vmatmul.mubr.f32.gmra.mxu0 %v1118
        %v1279 = vpop.f32.mrf.mxu0
        %v1280 = vadd.f32 %v1161, %v1279
        %v1281 = vpop.f32.mrf.mxu0
        %1282 = vmatprep.mubr.f32.mxu0 0.0
        %1283 = vmatmul.mubr.f32.gmra.mxu0 %v1119
        %v1284 = vpop.f32.mrf.mxu0
        %v1285 = vadd.f32 %v1161, %v1284
        %v1286 = vpop.f32.mrf.mxu0
        %1287 = vmatprep.mubr.f32.mxu0 0.0
        %1288 = vmatmul.mubr.f32.gmra.mxu0 %v1120
        %v1289 = vpop.f32.mrf.mxu0
        %v1290 = vadd.f32 %v1161, %v1289
        %v1291 = vpop.f32.mrf.mxu0
        %1292 = vmatprep.mubr.f32.mxu0 0.0
        %1293 = vmatmul.mubr.f32.gmra.mxu0 %v1121
        %v1294 = vpop.f32.mrf.mxu0
        %v1295 = vadd.f32 %v1161, %v1294
        %v1296 = vpop.f32.mrf.mxu0
        %1297 = vmatprep.mubr.f32.mxu0 0.0
        %1298 = vmatmul.mubr.f32.gmra.mxu0 %v1122
        %v1299 = vpop.f32.mrf.mxu0
        %v1300 = vadd.f32 %v1161, %v1299
        %v1301 = vpop.f32.mrf.mxu0
        %1302 = vmatprep.mubr.f32.mxu0 0.0
        %1303 = vmatmul.mubr.f32.gmra.mxu0 %v1123
        %v1304 = vpop.f32.mrf.mxu0
        %v1305 = vadd.f32 %v1161, %v1304
        %v1306 = vpop.f32.mrf.mxu0
        %1307 = vmatprep.mubr.f32.mxu0 0.0
        %1308 = vmatmul.mubr.f32.gmra.mxu0 %v1124
        %v1309 = vpop.f32.mrf.mxu0
        %v1310 = vadd.f32 %v1161, %v1309
        %v1311 = vpop.f32.mrf.mxu0
        %1312 = vmatprep.mubr.f32.mxu0 0.0
        %1313 = vmatmul.mubr.f32.gmra.mxu0 %v1125
        %v1314 = vpop.f32.mrf.mxu0
        %v1315 = vadd.f32 %v1161, %v1314
        %v1316 = vpop.f32.mrf.mxu0
        %1317 = vmatprep.mubr.f32.mxu0 0.0
        %1318 = vmatmul.mubr.f32.gmra.mxu0 %v1126
        %v1319 = vpop.f32.mrf.mxu0
        %v1320 = vadd.f32 %v1161, %v1319
        %v1321 = vpop.f32.mrf.mxu0
        %1322 = vmatprep.mubr.f32.mxu0 0.0
        %1323 = vmatmul.mubr.f32.gmra.mxu0 %v1127
        %v1324 = vpop.f32.mrf.mxu0
        %v1325 = vadd.f32 %v1161, %v1324
        %v1326 = vpop.f32.mrf.mxu0
        %1327 = vmatprep.mubr.f32.mxu0 0.0
        %1328 = vmatmul.mubr.f32.gmra.mxu0 %v1128
        %v1329 = vpop.f32.mrf.mxu0
        %v1330 = vadd.f32 %v1161, %v1329
        %v1331 = vpop.f32.mrf.mxu0
        %1332 = vmatprep.mubr.f32.mxu0 0.0
        %1333 = vmatmul.mubr.f32.gmra.mxu0 %v1129
        %v1334 = vpop.f32.mrf.mxu0
        %v1335 = vadd.f32 %v1161, %v1334
        %v1336 = vpop.f32.mrf.mxu0
        %1337 = vmatprep.mubr.f32.mxu0 0.0
        %1338 = vmatmul.mubr.f32.gmra.mxu0 %v1130
        %v1339 = vpop.f32.mrf.mxu0
        %v1340 = vadd.f32 %v1161, %v1339
        %v1341 = vpop.f32.mrf.mxu0
        %1342 = vmatprep.mubr.f32.mxu0 0.0
        %1343 = vmatmul.mubr.f32.gmra.mxu0 %v1131
        %v1344 = vpop.f32.mrf.mxu0
        %v1345 = vadd.f32 %v1161, %v1344
        %v1346 = vpop.f32.mrf.mxu0
        %1347 = vmatprep.mubr.f32.mxu0 0.0
        %1348 = vmatmul.mubr.f32.gmra.mxu0 %v1132
        %v1349 = vpop.f32.mrf.mxu0
        %v1350 = vadd.f32 %v1161, %v1349
        %v1351 = vpop.f32.mrf.mxu0
        %1352 = vmatprep.mubr.f32.mxu0 0.0
        %1353 = vmatmul.mubr.f32.gmra.mxu0 %v1133
        %v1354 = vpop.f32.mrf.mxu0
        %v1355 = vadd.f32 %v1161, %v1354
        %v1356 = vpop.f32.mrf.mxu0
        %1357 = vmatprep.mubr.f32.mxu0 0.0
        %1358 = vmatmul.mubr.f32.gmra.mxu0 %v1134
        %v1359 = vpop.f32.mrf.mxu0
        %v1360 = vadd.f32 %v1161, %v1359
        %v1361 = vpop.f32.mrf.mxu0
        %1362 = vmatprep.mubr.f32.mxu0 0.0
        %1363 = vmatmul.mubr.f32.gmra.mxu0 %v1135
        %v1364 = vpop.f32.mrf.mxu0
        %v1365 = vadd.f32 %v1161, %v1364
        %v1366 = vpop.f32.mrf.mxu0
        %1367 = vmatprep.mubr.f32.mxu0 0.0
        %1368 = vmatmul.mubr.f32.gmra.mxu0 %v1136
        %v1369 = vpop.f32.mrf.mxu0
        %v1370 = vadd.f32 %v1161, %v1369
        %v1371 = vpop.f32.mrf.mxu0
        %1372 = vmatprep.mubr.f32.mxu0 0.0
        %1373 = vmatmul.mubr.f32.gmra.mxu0 %v1137
        %v1374 = vpop.f32.mrf.mxu0
        %v1375 = vadd.f32 %v1161, %v1374
        %v1376 = vpop.f32.mrf.mxu0
        %1377 = vmatprep.mubr.f32.mxu0 0.0
        %1378 = vmatmul.mubr.f32.gmra.mxu0 %v1138
        %v1379 = vpop.f32.mrf.mxu0
        %v1380 = vadd.f32 %v1161, %v1379
        %v1381 = vpop.f32.mrf.mxu0
        %1382 = vmatprep.mubr.f32.mxu0 0.0
        %1383 = vmatmul.mubr.f32.gmra.mxu0 %v1139
        %v1384 = vpop.f32.mrf.mxu0
        %v1385 = vadd.f32 %v1161, %v1384
        %v1386 = vpop.f32.mrf.mxu0
        %1387 = vdwg.mxu0
        %v1388 = vadd.f32 %v1230, %v828
        %v1389 = vadd.f32 %v1235, %v829
        %v1390 = vadd.f32 %v1240, %v830
        %v1391 = vadd.f32 %v1245, %v831
        %v1392 = vadd.f32 %v1250, %v832
        %v1393 = vadd.f32 %v1255, %v833
        %v1394 = vadd.f32 %v1260, %v834
        %v1395 = vadd.f32 %v1265, %v835
        %v1396 = vadd.f32 %v1270, %v836
        %v1397 = vadd.f32 %v1275, %v837
        %v1398 = vadd.f32 %v1280, %v838
        %v1399 = vadd.f32 %v1285, %v839
        %v1400 = vadd.f32 %v1290, %v840
        %v1401 = vadd.f32 %v1295, %v841
        %v1402 = vadd.f32 %v1300, %v842
        %v1403 = vadd.f32 %v1305, %v843
        %v1404 = vadd.f32 %v1310, %v844
        %v1405 = vadd.f32 %v1315, %v845
        %v1406 = vadd.f32 %v1320, %v846
        %v1407 = vadd.f32 %v1325, %v847
        %v1408 = vadd.f32 %v1330, %v848
        %v1409 = vadd.f32 %v1335, %v849
        %v1410 = vadd.f32 %v1340, %v850
        %v1411 = vadd.f32 %v1345, %v851
        %v1412 = vadd.f32 %v1350, %v852
        %v1413 = vadd.f32 %v1355, %v853
        %v1414 = vadd.f32 %v1360, %v854
        %v1415 = vadd.f32 %v1365, %v855
        %v1416 = vadd.f32 %v1370, %v856
        %v1417 = vadd.f32 %v1375, %v857
        %v1418 = vadd.f32 %v1380, %v858
        %v1419 = vadd.f32 %v1385, %v859
        %v1420 = vmax.f32 %v1388, 0.0
        %v1421 = vmax.f32 %v1389, 0.0
        %v1422 = vmax.f32 %v1390, 0.0
        %v1423 = vmax.f32 %v1391, 0.0
        %v1424 = vmax.f32 %v1392, 0.0
        %v1425 = vmax.f32 %v1393, 0.0
        %v1426 = vmax.f32 %v1394, 0.0
        %v1427 = vmax.f32 %v1395, 0.0
        %v1428 = vmax.f32 %v1396, 0.0
        %v1429 = vmax.f32 %v1397, 0.0
        %v1430 = vmax.f32 %v1398, 0.0
        %v1431 = vmax.f32 %v1399, 0.0
        %v1432 = vmax.f32 %v1400, 0.0
        %v1433 = vmax.f32 %v1401, 0.0
        %v1434 = vmax.f32 %v1402, 0.0
        %v1435 = vmax.f32 %v1403, 0.0
        %v1436 = vmax.f32 %v1404, 0.0
        %v1437 = vmax.f32 %v1405, 0.0
        %v1438 = vmax.f32 %v1406, 0.0
        %v1439 = vmax.f32 %v1407, 0.0
        %v1440 = vmax.f32 %v1408, 0.0
        %v1441 = vmax.f32 %v1409, 0.0
        %v1442 = vmax.f32 %v1410, 0.0
        %v1443 = vmax.f32 %v1411, 0.0
        %v1444 = vmax.f32 %v1412, 0.0
        %v1445 = vmax.f32 %v1413, 0.0
        %v1446 = vmax.f32 %v1414, 0.0
        %v1447 = vmax.f32 %v1415, 0.0
        %v1448 = vmax.f32 %v1416, 0.0
        %v1449 = vmax.f32 %v1417, 0.0
        %v1450 = vmax.f32 %v1418, 0.0
        %v1451 = vmax.f32 %v1419, 0.0
        %v1452 = vld [vmem:[#allocation10] sm:$0xff]
        %v1453 = vld [vmem:[#allocation10 + $0x8] sm:$0xff]
        %v1454 = vld [vmem:[#allocation10 + $0x10] sm:$0xff]
        %v1455 = vld [vmem:[#allocation10 + $0x18] sm:$0xff]
        %v1456 = vld [vmem:[#allocation10 + $0x20] sm:$0xff]
        %v1457 = vld [vmem:[#allocation10 + $0x28] sm:$0xff]
        %v1458 = vld [vmem:[#allocation10 + $0x30] sm:$0xff]
        %v1459 = vld [vmem:[#allocation10 + $0x38] sm:$0xff]
        %v1460 = vld [vmem:[#allocation10 + $0x40] sm:$0xff]
        %v1461 = vld [vmem:[#allocation10 + $0x48] sm:$0xff]
        %v1462 = vld [vmem:[#allocation10 + $0x50] sm:$0xff]
        %v1463 = vld [vmem:[#allocation10 + $0x58] sm:$0xff]
        %v1464 = vld [vmem:[#allocation10 + $0x60] sm:$0xff]
        %v1465 = vld [vmem:[#allocation10 + $0x68] sm:$0xff]
        %v1466 = vld [vmem:[#allocation10 + $0x70] sm:$0xff]
        %v1467 = vld [vmem:[#allocation10 + $0x78] sm:$0xff]
        %v1468 = vld [vmem:[%s8] sm:$0x1]
        %v1470 = vlaneseq
        %v1471 = vshrl.u32 %v1470, 7
        %v1472 = vsub.s32 0, %v1471
        %v1473 = vrot.slane %v1468, %v1472
        %1475 = vmatprep.subr.mxu0 0.0
        %1476 = vmatpush1.msra.mxu0 %v1467
        %1477 = vmatprep.subr.mxu0 0.0
        %1478 = vmatpush1.msra.mxu0 %v1466
        %1479 = vmatprep.subr.mxu0 0.0
        %1480 = vmatpush1.msra.mxu0 %v1465
        %1481 = vmatprep.subr.mxu0 0.0
        %1482 = vmatpush1.msra.mxu0 %v1464
        %1483 = vmatprep.subr.mxu0 0.0
        %1484 = vmatpush1.msra.mxu0 %v1463
        %1485 = vmatprep.subr.mxu0 0.0
        %1486 = vmatpush1.msra.mxu0 %v1462
        %1487 = vmatprep.subr.mxu0 0.0
        %1488 = vmatpush1.msra.mxu0 %v1461
        %1489 = vmatprep.subr.mxu0 0.0
        %1490 = vmatpush1.msra.mxu0 %v1460
        %1491 = vmatprep.subr.mxu0 0.0
        %1492 = vmatpush1.msra.mxu0 %v1459
        %1493 = vmatprep.subr.mxu0 0.0
        %1494 = vmatpush1.msra.mxu0 %v1458
        %1495 = vmatprep.subr.mxu0 0.0
        %1496 = vmatpush1.msra.mxu0 %v1457
        %1497 = vmatprep.subr.mxu0 0.0
        %1498 = vmatpush1.msra.mxu0 %v1456
        %1499 = vmatprep.subr.mxu0 0.0
        %1500 = vmatpush1.msra.mxu0 %v1455
        %1501 = vmatprep.subr.mxu0 0.0
        %1502 = vmatpush1.msra.mxu0 %v1454
        %1503 = vmatprep.subr.mxu0 0.0
        %1504 = vmatpush1.msra.mxu0 %v1453
        %1505 = vmatprep.subr.mxu0 0.0
        %1506 = vmatpush1.msra.mxu0 %v1452
        %1507 = vmatprep.subr.mxu0 0.0
        %1508 = vmatpush2.msra.mxu0 0.0
        %1509 = vmatprep.subr.mxu0 0.0
        %1510 = vmatpush2.msra.mxu0 0.0
        %1511 = vmatprep.subr.mxu0 0.0
        %1512 = vmatpush2.msra.mxu0 0.0
        %1513 = vmatprep.subr.mxu0 0.0
        %1514 = vmatpush2.msra.mxu0 0.0
        %1515 = vmatprep.subr.mxu0 0.0
        %1516 = vmatpush2.msra.mxu0 0.0
        %1517 = vmatprep.subr.mxu0 0.0
        %1518 = vmatpush2.msra.mxu0 0.0
        %1519 = vmatprep.subr.mxu0 0.0
        %1520 = vmatpush2.msra.mxu0 0.0
        %1521 = vmatprep.subr.mxu0 0.0
        %1522 = vmatpush2.msra.mxu0 0.0
        %1523 = vmatprep.subr.mxu0 0.0
        %1524 = vmatpush2.msra.mxu0 0.0
        %1525 = vmatprep.subr.mxu0 0.0
        %1526 = vmatpush2.msra.mxu0 0.0
        %1527 = vmatprep.subr.mxu0 0.0
        %1528 = vmatpush2.msra.mxu0 0.0
        %1529 = vmatprep.subr.mxu0 0.0
        %1530 = vmatpush2.msra.mxu0 0.0
        %1531 = vmatprep.subr.mxu0 0.0
        %1532 = vmatpush2.msra.mxu0 0.0
        %1533 = vmatprep.subr.mxu0 0.0
        %1534 = vmatpush2.msra.mxu0 0.0
        %1535 = vmatprep.subr.mxu0 0.0
        %1536 = vmatpush2.msra.mxu0 0.0
        %1537 = vmatprep.subr.mxu0 0.0
        %1538 = vmatpush2.msra.mxu0 0.0
        %1539 = vmatprep.mubr.f32.mxu0 0.0
        %1540 = vmatmul.mubr.f32.gmra.mxu0 %v1420
        %v1541 = vpop.f32.mrf.mxu0
        %v1542 = vadd.f32 %v1473, %v1541
        %v1543 = vpop.f32.mrf.mxu0
        %1544 = vmatprep.mubr.f32.mxu0 0.0
        %1545 = vmatmul.mubr.f32.gmra.mxu0 %v1421
        %v1546 = vpop.f32.mrf.mxu0
        %v1547 = vadd.f32 %v1473, %v1546
        %v1548 = vpop.f32.mrf.mxu0
        %1549 = vmatprep.mubr.f32.mxu0 0.0
        %1550 = vmatmul.mubr.f32.gmra.mxu0 %v1422
        %v1551 = vpop.f32.mrf.mxu0
        %v1552 = vadd.f32 %v1473, %v1551
        %v1553 = vpop.f32.mrf.mxu0
        %1554 = vmatprep.mubr.f32.mxu0 0.0
        %1555 = vmatmul.mubr.f32.gmra.mxu0 %v1423
        %v1556 = vpop.f32.mrf.mxu0
        %v1557 = vadd.f32 %v1473, %v1556
        %v1558 = vpop.f32.mrf.mxu0
        %1559 = vmatprep.mubr.f32.mxu0 0.0
        %1560 = vmatmul.mubr.f32.gmra.mxu0 %v1424
        %v1561 = vpop.f32.mrf.mxu0
        %v1562 = vadd.f32 %v1473, %v1561
        %v1563 = vpop.f32.mrf.mxu0
        %1564 = vmatprep.mubr.f32.mxu0 0.0
        %1565 = vmatmul.mubr.f32.gmra.mxu0 %v1425
        %v1566 = vpop.f32.mrf.mxu0
        %v1567 = vadd.f32 %v1473, %v1566
        %v1568 = vpop.f32.mrf.mxu0
        %1569 = vmatprep.mubr.f32.mxu0 0.0
        %1570 = vmatmul.mubr.f32.gmra.mxu0 %v1426
        %v1571 = vpop.f32.mrf.mxu0
        %v1572 = vadd.f32 %v1473, %v1571
        %v1573 = vpop.f32.mrf.mxu0
        %1574 = vmatprep.mubr.f32.mxu0 0.0
        %1575 = vmatmul.mubr.f32.gmra.mxu0 %v1427
        %v1576 = vpop.f32.mrf.mxu0
        %v1577 = vadd.f32 %v1473, %v1576
        %v1578 = vpop.f32.mrf.mxu0
        %1579 = vmatprep.mubr.f32.mxu0 0.0
        %1580 = vmatmul.mubr.f32.gmra.mxu0 %v1428
        %v1581 = vpop.f32.mrf.mxu0
        %v1582 = vadd.f32 %v1473, %v1581
        %v1583 = vpop.f32.mrf.mxu0
        %1584 = vmatprep.mubr.f32.mxu0 0.0
        %1585 = vmatmul.mubr.f32.gmra.mxu0 %v1429
        %v1586 = vpop.f32.mrf.mxu0
        %v1587 = vadd.f32 %v1473, %v1586
        %v1588 = vpop.f32.mrf.mxu0
        %1589 = vmatprep.mubr.f32.mxu0 0.0
        %1590 = vmatmul.mubr.f32.gmra.mxu0 %v1430
        %v1591 = vpop.f32.mrf.mxu0
        %v1592 = vadd.f32 %v1473, %v1591
        %v1593 = vpop.f32.mrf.mxu0
        %1594 = vmatprep.mubr.f32.mxu0 0.0
        %1595 = vmatmul.mubr.f32.gmra.mxu0 %v1431
        %v1596 = vpop.f32.mrf.mxu0
        %v1597 = vadd.f32 %v1473, %v1596
        %v1598 = vpop.f32.mrf.mxu0
        %1599 = vmatprep.mubr.f32.mxu0 0.0
        %1600 = vmatmul.mubr.f32.gmra.mxu0 %v1432
        %v1601 = vpop.f32.mrf.mxu0
        %v1602 = vadd.f32 %v1473, %v1601
        %v1603 = vpop.f32.mrf.mxu0
        %1604 = vmatprep.mubr.f32.mxu0 0.0
        %1605 = vmatmul.mubr.f32.gmra.mxu0 %v1433
        %v1606 = vpop.f32.mrf.mxu0
        %v1607 = vadd.f32 %v1473, %v1606
        %v1608 = vpop.f32.mrf.mxu0
        %1609 = vmatprep.mubr.f32.mxu0 0.0
        %1610 = vmatmul.mubr.f32.gmra.mxu0 %v1434
        %v1611 = vpop.f32.mrf.mxu0
        %v1612 = vadd.f32 %v1473, %v1611
        %v1613 = vpop.f32.mrf.mxu0
        %1614 = vmatprep.mubr.f32.mxu0 0.0
        %1615 = vmatmul.mubr.f32.gmra.mxu0 %v1435
        %v1616 = vpop.f32.mrf.mxu0
        %v1617 = vadd.f32 %v1473, %v1616
        %v1618 = vpop.f32.mrf.mxu0
        %1619 = vmatprep.mubr.f32.mxu0 0.0
        %1620 = vmatmul.mubr.f32.gmra.mxu0 %v1436
        %v1621 = vpop.f32.mrf.mxu0
        %v1622 = vadd.f32 %v1473, %v1621
        %v1623 = vpop.f32.mrf.mxu0
        %1624 = vmatprep.mubr.f32.mxu0 0.0
        %1625 = vmatmul.mubr.f32.gmra.mxu0 %v1437
        %v1626 = vpop.f32.mrf.mxu0
        %v1627 = vadd.f32 %v1473, %v1626
        %v1628 = vpop.f32.mrf.mxu0
        %1629 = vmatprep.mubr.f32.mxu0 0.0
        %1630 = vmatmul.mubr.f32.gmra.mxu0 %v1438
        %v1631 = vpop.f32.mrf.mxu0
        %v1632 = vadd.f32 %v1473, %v1631
        %v1633 = vpop.f32.mrf.mxu0
        %1634 = vmatprep.mubr.f32.mxu0 0.0
        %1635 = vmatmul.mubr.f32.gmra.mxu0 %v1439
        %v1636 = vpop.f32.mrf.mxu0
        %v1637 = vadd.f32 %v1473, %v1636
        %v1638 = vpop.f32.mrf.mxu0
        %1639 = vmatprep.mubr.f32.mxu0 0.0
        %1640 = vmatmul.mubr.f32.gmra.mxu0 %v1440
        %v1641 = vpop.f32.mrf.mxu0
        %v1642 = vadd.f32 %v1473, %v1641
        %v1643 = vpop.f32.mrf.mxu0
        %1644 = vmatprep.mubr.f32.mxu0 0.0
        %1645 = vmatmul.mubr.f32.gmra.mxu0 %v1441
        %v1646 = vpop.f32.mrf.mxu0
        %v1647 = vadd.f32 %v1473, %v1646
        %v1648 = vpop.f32.mrf.mxu0
        %1649 = vmatprep.mubr.f32.mxu0 0.0
        %1650 = vmatmul.mubr.f32.gmra.mxu0 %v1442
        %v1651 = vpop.f32.mrf.mxu0
        %v1652 = vadd.f32 %v1473, %v1651
        %v1653 = vpop.f32.mrf.mxu0
        %1654 = vmatprep.mubr.f32.mxu0 0.0
        %1655 = vmatmul.mubr.f32.gmra.mxu0 %v1443
        %v1656 = vpop.f32.mrf.mxu0
        %v1657 = vadd.f32 %v1473, %v1656
        %v1658 = vpop.f32.mrf.mxu0
        %1659 = vmatprep.mubr.f32.mxu0 0.0
        %1660 = vmatmul.mubr.f32.gmra.mxu0 %v1444
        %v1661 = vpop.f32.mrf.mxu0
        %v1662 = vadd.f32 %v1473, %v1661
        %v1663 = vpop.f32.mrf.mxu0
        %1664 = vmatprep.mubr.f32.mxu0 0.0
        %1665 = vmatmul.mubr.f32.gmra.mxu0 %v1445
        %v1666 = vpop.f32.mrf.mxu0
        %v1667 = vadd.f32 %v1473, %v1666
        %v1668 = vpop.f32.mrf.mxu0
        %1669 = vmatprep.mubr.f32.mxu0 0.0
        %1670 = vmatmul.mubr.f32.gmra.mxu0 %v1446
        %v1671 = vpop.f32.mrf.mxu0
        %v1672 = vadd.f32 %v1473, %v1671
        %v1673 = vpop.f32.mrf.mxu0
        %1674 = vmatprep.mubr.f32.mxu0 0.0
        %1675 = vmatmul.mubr.f32.gmra.mxu0 %v1447
        %v1676 = vpop.f32.mrf.mxu0
        %v1677 = vadd.f32 %v1473, %v1676
        %v1678 = vpop.f32.mrf.mxu0
        %1679 = vmatprep.mubr.f32.mxu0 0.0
        %1680 = vmatmul.mubr.f32.gmra.mxu0 %v1448
        %v1681 = vpop.f32.mrf.mxu0
        %v1682 = vadd.f32 %v1473, %v1681
        %v1683 = vpop.f32.mrf.mxu0
        %1684 = vmatprep.mubr.f32.mxu0 0.0
        %1685 = vmatmul.mubr.f32.gmra.mxu0 %v1449
        %v1686 = vpop.f32.mrf.mxu0
        %v1687 = vadd.f32 %v1473, %v1686
        %v1688 = vpop.f32.mrf.mxu0
        %1689 = vmatprep.mubr.f32.mxu0 0.0
        %1690 = vmatmul.mubr.f32.gmra.mxu0 %v1450
        %v1691 = vpop.f32.mrf.mxu0
        %v1692 = vadd.f32 %v1473, %v1691
        %v1693 = vpop.f32.mrf.mxu0
        %1694 = vmatprep.mubr.f32.mxu0 0.0
        %1695 = vmatmul.mubr.f32.gmra.mxu0 %v1451
        %v1696 = vpop.f32.mrf.mxu0
        %v1697 = vadd.f32 %v1473, %v1696
        %v1698 = vpop.f32.mrf.mxu0
        %1699 = vdwg.mxu0
        %v1700 = vmax.f32 %v1542, 0.0
        %v1701 = vmax.f32 %v1547, 0.0
        %v1702 = vmax.f32 %v1552, 0.0
        %v1703 = vmax.f32 %v1557, 0.0
        %v1704 = vmax.f32 %v1562, 0.0
        %v1705 = vmax.f32 %v1567, 0.0
        %v1706 = vmax.f32 %v1572, 0.0
        %v1707 = vmax.f32 %v1577, 0.0
        %v1708 = vmax.f32 %v1582, 0.0
        %v1709 = vmax.f32 %v1587, 0.0
        %v1710 = vmax.f32 %v1592, 0.0
        %v1711 = vmax.f32 %v1597, 0.0
        %v1712 = vmax.f32 %v1602, 0.0
        %v1713 = vmax.f32 %v1607, 0.0
        %v1714 = vmax.f32 %v1612, 0.0
        %v1715 = vmax.f32 %v1617, 0.0
        %v1716 = vmax.f32 %v1622, 0.0
        %v1717 = vmax.f32 %v1627, 0.0
        %v1718 = vmax.f32 %v1632, 0.0
        %v1719 = vmax.f32 %v1637, 0.0
        %v1720 = vmax.f32 %v1642, 0.0
        %v1721 = vmax.f32 %v1647, 0.0
        %v1722 = vmax.f32 %v1652, 0.0
        %v1723 = vmax.f32 %v1657, 0.0
        %v1724 = vmax.f32 %v1662, 0.0
        %v1725 = vmax.f32 %v1667, 0.0
        %v1726 = vmax.f32 %v1672, 0.0
        %v1727 = vmax.f32 %v1677, 0.0
        %v1728 = vmax.f32 %v1682, 0.0
        %v1729 = vmax.f32 %v1687, 0.0
        %v1730 = vmax.f32 %v1692, 0.0
        %v1731 = vmax.f32 %v1697, 0.0
        %v1732 = vld [vmem:[#allocation11] sm:$0xff]
        %v1733 = vld [vmem:[#allocation11 + $0x8] sm:$0xff]
        %v1734 = vld [vmem:[#allocation11 + $0x10] sm:$0xff]
        %v1735 = vld [vmem:[#allocation11 + $0x18] sm:$0xff]
        %v1736 = vld [vmem:[#allocation11 + $0x20] sm:$0xff]
        %v1737 = vld [vmem:[#allocation11 + $0x28] sm:$0xff]
        %v1738 = vld [vmem:[#allocation11 + $0x30] sm:$0xff]
        %v1739 = vld [vmem:[#allocation11 + $0x38] sm:$0xff]
        %v1740 = vld [vmem:[#allocation11 + $0x40] sm:$0xff]
        %v1741 = vld [vmem:[#allocation11 + $0x48] sm:$0xff]
        %v1742 = vld [vmem:[#allocation11 + $0x50] sm:$0xff]
        %v1743 = vld [vmem:[#allocation11 + $0x58] sm:$0xff]
        %v1744 = vld [vmem:[#allocation11 + $0x60] sm:$0xff]
        %v1745 = vld [vmem:[#allocation11 + $0x68] sm:$0xff]
        %v1746 = vld [vmem:[#allocation11 + $0x70] sm:$0xff]
        %v1747 = vld [vmem:[#allocation11 + $0x78] sm:$0xff]
        %v1748 = vld [vmem:[%s10] sm:$0x1]
        %v1750 = vlaneseq
        %v1751 = vshrl.u32 %v1750, 7
        %v1752 = vsub.s32 0, %v1751
        %v1753 = vrot.slane %v1748, %v1752
        %1755 = vmatprep.subr.mxu0 0.0
        %1756 = vmatpush1.msra.mxu0 %v1747
        %1757 = vmatprep.subr.mxu0 0.0
        %1758 = vmatpush1.msra.mxu0 %v1746
        %1759 = vmatprep.subr.mxu0 0.0
        %1760 = vmatpush1.msra.mxu0 %v1745
        %1761 = vmatprep.subr.mxu0 0.0
        %1762 = vmatpush1.msra.mxu0 %v1744
        %1763 = vmatprep.subr.mxu0 0.0
        %1764 = vmatpush1.msra.mxu0 %v1743
        %1765 = vmatprep.subr.mxu0 0.0
        %1766 = vmatpush1.msra.mxu0 %v1742
        %1767 = vmatprep.subr.mxu0 0.0
        %1768 = vmatpush1.msra.mxu0 %v1741
        %1769 = vmatprep.subr.mxu0 0.0
        %1770 = vmatpush1.msra.mxu0 %v1740
        %1771 = vmatprep.subr.mxu0 0.0
        %1772 = vmatpush1.msra.mxu0 %v1739
        %1773 = vmatprep.subr.mxu0 0.0
        %1774 = vmatpush1.msra.mxu0 %v1738
        %1775 = vmatprep.subr.mxu0 0.0
        %1776 = vmatpush1.msra.mxu0 %v1737
        %1777 = vmatprep.subr.mxu0 0.0
        %1778 = vmatpush1.msra.mxu0 %v1736
        %1779 = vmatprep.subr.mxu0 0.0
        %1780 = vmatpush1.msra.mxu0 %v1735
        %1781 = vmatprep.subr.mxu0 0.0
        %1782 = vmatpush1.msra.mxu0 %v1734
        %1783 = vmatprep.subr.mxu0 0.0
        %1784 = vmatpush1.msra.mxu0 %v1733
        %1785 = vmatprep.subr.mxu0 0.0
        %1786 = vmatpush1.msra.mxu0 %v1732
        %1787 = vmatprep.subr.mxu0 0.0
        %1788 = vmatpush2.msra.mxu0 0.0
        %1789 = vmatprep.subr.mxu0 0.0
        %1790 = vmatpush2.msra.mxu0 0.0
        %1791 = vmatprep.subr.mxu0 0.0
        %1792 = vmatpush2.msra.mxu0 0.0
        %1793 = vmatprep.subr.mxu0 0.0
        %1794 = vmatpush2.msra.mxu0 0.0
        %1795 = vmatprep.subr.mxu0 0.0
        %1796 = vmatpush2.msra.mxu0 0.0
        %1797 = vmatprep.subr.mxu0 0.0
        %1798 = vmatpush2.msra.mxu0 0.0
        %1799 = vmatprep.subr.mxu0 0.0
        %1800 = vmatpush2.msra.mxu0 0.0
        %1801 = vmatprep.subr.mxu0 0.0
        %1802 = vmatpush2.msra.mxu0 0.0
        %1803 = vmatprep.subr.mxu0 0.0
        %1804 = vmatpush2.msra.mxu0 0.0
        %1805 = vmatprep.subr.mxu0 0.0
        %1806 = vmatpush2.msra.mxu0 0.0
        %1807 = vmatprep.subr.mxu0 0.0
        %1808 = vmatpush2.msra.mxu0 0.0
        %1809 = vmatprep.subr.mxu0 0.0
        %1810 = vmatpush2.msra.mxu0 0.0
        %1811 = vmatprep.subr.mxu0 0.0
        %1812 = vmatpush2.msra.mxu0 0.0
        %1813 = vmatprep.subr.mxu0 0.0
        %1814 = vmatpush2.msra.mxu0 0.0
        %1815 = vmatprep.subr.mxu0 0.0
        %1816 = vmatpush2.msra.mxu0 0.0
        %1817 = vmatprep.subr.mxu0 0.0
        %1818 = vmatpush2.msra.mxu0 0.0
        %1819 = vmatprep.mubr.f32.mxu0 0.0
        %1820 = vmatmul.mubr.f32.gmra.mxu0 %v1700
        %v1821 = vpop.f32.mrf.mxu0
        %v1822 = vadd.f32 %v1753, %v1821
        %v1823 = vpop.f32.mrf.mxu0
        %1824 = vmatprep.mubr.f32.mxu0 0.0
        %1825 = vmatmul.mubr.f32.gmra.mxu0 %v1701
        %v1826 = vpop.f32.mrf.mxu0
        %v1827 = vadd.f32 %v1753, %v1826
        %v1828 = vpop.f32.mrf.mxu0
        %1829 = vmatprep.mubr.f32.mxu0 0.0
        %1830 = vmatmul.mubr.f32.gmra.mxu0 %v1702
        %v1831 = vpop.f32.mrf.mxu0
        %v1832 = vadd.f32 %v1753, %v1831
        %v1833 = vpop.f32.mrf.mxu0
        %1834 = vmatprep.mubr.f32.mxu0 0.0
        %1835 = vmatmul.mubr.f32.gmra.mxu0 %v1703
        %v1836 = vpop.f32.mrf.mxu0
        %v1837 = vadd.f32 %v1753, %v1836
        %v1838 = vpop.f32.mrf.mxu0
        %1839 = vmatprep.mubr.f32.mxu0 0.0
        %1840 = vmatmul.mubr.f32.gmra.mxu0 %v1704
        %v1841 = vpop.f32.mrf.mxu0
        %v1842 = vadd.f32 %v1753, %v1841
        %v1843 = vpop.f32.mrf.mxu0
        %1844 = vmatprep.mubr.f32.mxu0 0.0
        %1845 = vmatmul.mubr.f32.gmra.mxu0 %v1705
        %v1846 = vpop.f32.mrf.mxu0
        %v1847 = vadd.f32 %v1753, %v1846
        %v1848 = vpop.f32.mrf.mxu0
        %1849 = vmatprep.mubr.f32.mxu0 0.0
        %1850 = vmatmul.mubr.f32.gmra.mxu0 %v1706
        %v1851 = vpop.f32.mrf.mxu0
        %v1852 = vadd.f32 %v1753, %v1851
        %v1853 = vpop.f32.mrf.mxu0
        %1854 = vmatprep.mubr.f32.mxu0 0.0
        %1855 = vmatmul.mubr.f32.gmra.mxu0 %v1707
        %v1856 = vpop.f32.mrf.mxu0
        %v1857 = vadd.f32 %v1753, %v1856
        %v1858 = vpop.f32.mrf.mxu0
        %1859 = vmatprep.mubr.f32.mxu0 0.0
        %1860 = vmatmul.mubr.f32.gmra.mxu0 %v1708
        %v1861 = vpop.f32.mrf.mxu0
        %v1862 = vadd.f32 %v1753, %v1861
        %v1863 = vpop.f32.mrf.mxu0
        %1864 = vmatprep.mubr.f32.mxu0 0.0
        %1865 = vmatmul.mubr.f32.gmra.mxu0 %v1709
        %v1866 = vpop.f32.mrf.mxu0
        %v1867 = vadd.f32 %v1753, %v1866
        %v1868 = vpop.f32.mrf.mxu0
        %1869 = vmatprep.mubr.f32.mxu0 0.0
        %1870 = vmatmul.mubr.f32.gmra.mxu0 %v1710
        %v1871 = vpop.f32.mrf.mxu0
        %v1872 = vadd.f32 %v1753, %v1871
        %v1873 = vpop.f32.mrf.mxu0
        %1874 = vmatprep.mubr.f32.mxu0 0.0
        %1875 = vmatmul.mubr.f32.gmra.mxu0 %v1711
        %v1876 = vpop.f32.mrf.mxu0
        %v1877 = vadd.f32 %v1753, %v1876
        %v1878 = vpop.f32.mrf.mxu0
        %1879 = vmatprep.mubr.f32.mxu0 0.0
        %1880 = vmatmul.mubr.f32.gmra.mxu0 %v1712
        %v1881 = vpop.f32.mrf.mxu0
        %v1882 = vadd.f32 %v1753, %v1881
        %v1883 = vpop.f32.mrf.mxu0
        %1884 = vmatprep.mubr.f32.mxu0 0.0
        %1885 = vmatmul.mubr.f32.gmra.mxu0 %v1713
        %v1886 = vpop.f32.mrf.mxu0
        %v1887 = vadd.f32 %v1753, %v1886
        %v1888 = vpop.f32.mrf.mxu0
        %1889 = vmatprep.mubr.f32.mxu0 0.0
        %1890 = vmatmul.mubr.f32.gmra.mxu0 %v1714
        %v1891 = vpop.f32.mrf.mxu0
        %v1892 = vadd.f32 %v1753, %v1891
        %v1893 = vpop.f32.mrf.mxu0
        %1894 = vmatprep.mubr.f32.mxu0 0.0
        %1895 = vmatmul.mubr.f32.gmra.mxu0 %v1715
        %v1896 = vpop.f32.mrf.mxu0
        %v1897 = vadd.f32 %v1753, %v1896
        %v1898 = vpop.f32.mrf.mxu0
        %1899 = vmatprep.mubr.f32.mxu0 0.0
        %1900 = vmatmul.mubr.f32.gmra.mxu0 %v1716
        %v1901 = vpop.f32.mrf.mxu0
        %v1902 = vadd.f32 %v1753, %v1901
        %v1903 = vpop.f32.mrf.mxu0
        %1904 = vmatprep.mubr.f32.mxu0 0.0
        %1905 = vmatmul.mubr.f32.gmra.mxu0 %v1717
        %v1906 = vpop.f32.mrf.mxu0
        %v1907 = vadd.f32 %v1753, %v1906
        %v1908 = vpop.f32.mrf.mxu0
        %1909 = vmatprep.mubr.f32.mxu0 0.0
        %1910 = vmatmul.mubr.f32.gmra.mxu0 %v1718
        %v1911 = vpop.f32.mrf.mxu0
        %v1912 = vadd.f32 %v1753, %v1911
        %v1913 = vpop.f32.mrf.mxu0
        %1914 = vmatprep.mubr.f32.mxu0 0.0
        %1915 = vmatmul.mubr.f32.gmra.mxu0 %v1719
        %v1916 = vpop.f32.mrf.mxu0
        %v1917 = vadd.f32 %v1753, %v1916
        %v1918 = vpop.f32.mrf.mxu0
        %1919 = vmatprep.mubr.f32.mxu0 0.0
        %1920 = vmatmul.mubr.f32.gmra.mxu0 %v1720
        %v1921 = vpop.f32.mrf.mxu0
        %v1922 = vadd.f32 %v1753, %v1921
        %v1923 = vpop.f32.mrf.mxu0
        %1924 = vmatprep.mubr.f32.mxu0 0.0
        %1925 = vmatmul.mubr.f32.gmra.mxu0 %v1721
        %v1926 = vpop.f32.mrf.mxu0
        %v1927 = vadd.f32 %v1753, %v1926
        %v1928 = vpop.f32.mrf.mxu0
        %1929 = vmatprep.mubr.f32.mxu0 0.0
        %1930 = vmatmul.mubr.f32.gmra.mxu0 %v1722
        %v1931 = vpop.f32.mrf.mxu0
        %v1932 = vadd.f32 %v1753, %v1931
        %v1933 = vpop.f32.mrf.mxu0
        %1934 = vmatprep.mubr.f32.mxu0 0.0
        %1935 = vmatmul.mubr.f32.gmra.mxu0 %v1723
        %v1936 = vpop.f32.mrf.mxu0
        %v1937 = vadd.f32 %v1753, %v1936
        %v1938 = vpop.f32.mrf.mxu0
        %1939 = vmatprep.mubr.f32.mxu0 0.0
        %1940 = vmatmul.mubr.f32.gmra.mxu0 %v1724
        %v1941 = vpop.f32.mrf.mxu0
        %v1942 = vadd.f32 %v1753, %v1941
        %v1943 = vpop.f32.mrf.mxu0
        %1944 = vmatprep.mubr.f32.mxu0 0.0
        %1945 = vmatmul.mubr.f32.gmra.mxu0 %v1725
        %v1946 = vpop.f32.mrf.mxu0
        %v1947 = vadd.f32 %v1753, %v1946
        %v1948 = vpop.f32.mrf.mxu0
        %1949 = vmatprep.mubr.f32.mxu0 0.0
        %1950 = vmatmul.mubr.f32.gmra.mxu0 %v1726
        %v1951 = vpop.f32.mrf.mxu0
        %v1952 = vadd.f32 %v1753, %v1951
        %v1953 = vpop.f32.mrf.mxu0
        %1954 = vmatprep.mubr.f32.mxu0 0.0
        %1955 = vmatmul.mubr.f32.gmra.mxu0 %v1727
        %v1956 = vpop.f32.mrf.mxu0
        %v1957 = vadd.f32 %v1753, %v1956
        %v1958 = vpop.f32.mrf.mxu0
        %1959 = vmatprep.mubr.f32.mxu0 0.0
        %1960 = vmatmul.mubr.f32.gmra.mxu0 %v1728
        %v1961 = vpop.f32.mrf.mxu0
        %v1962 = vadd.f32 %v1753, %v1961
        %v1963 = vpop.f32.mrf.mxu0
        %1964 = vmatprep.mubr.f32.mxu0 0.0
        %1965 = vmatmul.mubr.f32.gmra.mxu0 %v1729
        %v1966 = vpop.f32.mrf.mxu0
        %v1967 = vadd.f32 %v1753, %v1966
        %v1968 = vpop.f32.mrf.mxu0
        %1969 = vmatprep.mubr.f32.mxu0 0.0
        %1970 = vmatmul.mubr.f32.gmra.mxu0 %v1730
        %v1971 = vpop.f32.mrf.mxu0
        %v1972 = vadd.f32 %v1753, %v1971
        %v1973 = vpop.f32.mrf.mxu0
        %1974 = vmatprep.mubr.f32.mxu0 0.0
        %1975 = vmatmul.mubr.f32.gmra.mxu0 %v1731
        %v1976 = vpop.f32.mrf.mxu0
        %v1977 = vadd.f32 %v1753, %v1976
        %v1978 = vpop.f32.mrf.mxu0
        %1979 = vdwg.mxu0
        %v1980 = vadd.f32 %v1822, %v1420
        %v1981 = vadd.f32 %v1827, %v1421
        %v1982 = vadd.f32 %v1832, %v1422
        %v1983 = vadd.f32 %v1837, %v1423
        %v1984 = vadd.f32 %v1842, %v1424
        %v1985 = vadd.f32 %v1847, %v1425
        %v1986 = vadd.f32 %v1852, %v1426
        %v1987 = vadd.f32 %v1857, %v1427
        %v1988 = vadd.f32 %v1862, %v1428
        %v1989 = vadd.f32 %v1867, %v1429
        %v1990 = vadd.f32 %v1872, %v1430
        %v1991 = vadd.f32 %v1877, %v1431
        %v1992 = vadd.f32 %v1882, %v1432
        %v1993 = vadd.f32 %v1887, %v1433
        %v1994 = vadd.f32 %v1892, %v1434
        %v1995 = vadd.f32 %v1897, %v1435
        %v1996 = vadd.f32 %v1902, %v1436
        %v1997 = vadd.f32 %v1907, %v1437
        %v1998 = vadd.f32 %v1912, %v1438
        %v1999 = vadd.f32 %v1917, %v1439
        %v2000 = vadd.f32 %v1922, %v1440
        %v2001 = vadd.f32 %v1927, %v1441
        %v2002 = vadd.f32 %v1932, %v1442
        %v2003 = vadd.f32 %v1937, %v1443
        %v2004 = vadd.f32 %v1942, %v1444
        %v2005 = vadd.f32 %v1947, %v1445
        %v2006 = vadd.f32 %v1952, %v1446
        %v2007 = vadd.f32 %v1957, %v1447
        %v2008 = vadd.f32 %v1962, %v1448
        %v2009 = vadd.f32 %v1967, %v1449
        %v2010 = vadd.f32 %v1972, %v1450
        %v2011 = vadd.f32 %v1977, %v1451
        %v2012 = vmax.f32 %v1980, 0.0
        %v2013 = vmax.f32 %v1981, 0.0
        %v2014 = vmax.f32 %v1982, 0.0
        %v2015 = vmax.f32 %v1983, 0.0
        %v2016 = vmax.f32 %v1984, 0.0
        %v2017 = vmax.f32 %v1985, 0.0
        %v2018 = vmax.f32 %v1986, 0.0
        %v2019 = vmax.f32 %v1987, 0.0
        %v2020 = vmax.f32 %v1988, 0.0
        %v2021 = vmax.f32 %v1989, 0.0
        %v2022 = vmax.f32 %v1990, 0.0
        %v2023 = vmax.f32 %v1991, 0.0
        %v2024 = vmax.f32 %v1992, 0.0
        %v2025 = vmax.f32 %v1993, 0.0
        %v2026 = vmax.f32 %v1994, 0.0
        %v2027 = vmax.f32 %v1995, 0.0
        %v2028 = vmax.f32 %v1996, 0.0
        %v2029 = vmax.f32 %v1997, 0.0
        %v2030 = vmax.f32 %v1998, 0.0
        %v2031 = vmax.f32 %v1999, 0.0
        %v2032 = vmax.f32 %v2000, 0.0
        %v2033 = vmax.f32 %v2001, 0.0
        %v2034 = vmax.f32 %v2002, 0.0
        %v2035 = vmax.f32 %v2003, 0.0
        %v2036 = vmax.f32 %v2004, 0.0
        %v2037 = vmax.f32 %v2005, 0.0
        %v2038 = vmax.f32 %v2006, 0.0
        %v2039 = vmax.f32 %v2007, 0.0
        %v2040 = vmax.f32 %v2008, 0.0
        %v2041 = vmax.f32 %v2009, 0.0
        %v2042 = vmax.f32 %v2010, 0.0
        %v2043 = vmax.f32 %v2011, 0.0
        %v2044 = vld [vmem:[#allocation13] sm:$0xff]
        %v2045 = vld [vmem:[#allocation13 + $0x8] sm:$0xff]
        %v2046 = vld [vmem:[#allocation13 + $0x10] sm:$0xff]
        %v2047 = vld [vmem:[#allocation13 + $0x18] sm:$0xff]
        %v2048 = vld [vmem:[#allocation13 + $0x20] sm:$0xff]
        %v2049 = vld [vmem:[#allocation13 + $0x28] sm:$0xff]
        %v2050 = vld [vmem:[#allocation13 + $0x30] sm:$0xff]
        %v2051 = vld [vmem:[#allocation13 + $0x38] sm:$0xff]
        %v2052 = vld [vmem:[#allocation13 + $0x40] sm:$0xff]
        %v2053 = vld [vmem:[#allocation13 + $0x48] sm:$0xff]
        %v2054 = vld [vmem:[#allocation13 + $0x50] sm:$0xff]
        %v2055 = vld [vmem:[#allocation13 + $0x58] sm:$0xff]
        %v2056 = vld [vmem:[#allocation13 + $0x60] sm:$0xff]
        %v2057 = vld [vmem:[#allocation13 + $0x68] sm:$0xff]
        %v2058 = vld [vmem:[#allocation13 + $0x70] sm:$0xff]
        %v2059 = vld [vmem:[#allocation13 + $0x78] sm:$0xff]
        %v2060 = vld [vmem:[%s12] sm:$0x1]
        %v2062 = vlaneseq
        %v2063 = vshrl.u32 %v2062, 7
        %v2064 = vsub.s32 0, %v2063
        %v2065 = vrot.slane %v2060, %v2064
        %2067 = vmatprep.subr.mxu0 0.0
        %2068 = vmatpush1.msra.mxu0 %v2059
        %2069 = vmatprep.subr.mxu0 0.0
        %2070 = vmatpush1.msra.mxu0 %v2058
        %2071 = vmatprep.subr.mxu0 0.0
        %2072 = vmatpush1.msra.mxu0 %v2057
        %2073 = vmatprep.subr.mxu0 0.0
        %2074 = vmatpush1.msra.mxu0 %v2056
        %2075 = vmatprep.subr.mxu0 0.0
        %2076 = vmatpush1.msra.mxu0 %v2055
        %2077 = vmatprep.subr.mxu0 0.0
        %2078 = vmatpush1.msra.mxu0 %v2054
        %2079 = vmatprep.subr.mxu0 0.0
        %2080 = vmatpush1.msra.mxu0 %v2053
        %2081 = vmatprep.subr.mxu0 0.0
        %2082 = vmatpush1.msra.mxu0 %v2052
        %2083 = vmatprep.subr.mxu0 0.0
        %2084 = vmatpush1.msra.mxu0 %v2051
        %2085 = vmatprep.subr.mxu0 0.0
        %2086 = vmatpush1.msra.mxu0 %v2050
        %2087 = vmatprep.subr.mxu0 0.0
        %2088 = vmatpush1.msra.mxu0 %v2049
        %2089 = vmatprep.subr.mxu0 0.0
        %2090 = vmatpush1.msra.mxu0 %v2048
        %2091 = vmatprep.subr.mxu0 0.0
        %2092 = vmatpush1.msra.mxu0 %v2047
        %2093 = vmatprep.subr.mxu0 0.0
        %2094 = vmatpush1.msra.mxu0 %v2046
        %2095 = vmatprep.subr.mxu0 0.0
        %2096 = vmatpush1.msra.mxu0 %v2045
        %2097 = vmatprep.subr.mxu0 0.0
        %2098 = vmatpush1.msra.mxu0 %v2044
        %2099 = vmatprep.subr.mxu0 0.0
        %2100 = vmatpush2.msra.mxu0 0.0
        %2101 = vmatprep.subr.mxu0 0.0
        %2102 = vmatpush2.msra.mxu0 0.0
        %2103 = vmatprep.subr.mxu0 0.0
        %2104 = vmatpush2.msra.mxu0 0.0
        %2105 = vmatprep.subr.mxu0 0.0
        %2106 = vmatpush2.msra.mxu0 0.0
        %2107 = vmatprep.subr.mxu0 0.0
        %2108 = vmatpush2.msra.mxu0 0.0
        %2109 = vmatprep.subr.mxu0 0.0
        %2110 = vmatpush2.msra.mxu0 0.0
        %2111 = vmatprep.subr.mxu0 0.0
        %2112 = vmatpush2.msra.mxu0 0.0
        %2113 = vmatprep.subr.mxu0 0.0
        %2114 = vmatpush2.msra.mxu0 0.0
        %2115 = vmatprep.subr.mxu0 0.0
        %2116 = vmatpush2.msra.mxu0 0.0
        %2117 = vmatprep.subr.mxu0 0.0
        %2118 = vmatpush2.msra.mxu0 0.0
        %2119 = vmatprep.subr.mxu0 0.0
        %2120 = vmatpush2.msra.mxu0 0.0
        %2121 = vmatprep.subr.mxu0 0.0
        %2122 = vmatpush2.msra.mxu0 0.0
        %2123 = vmatprep.subr.mxu0 0.0
        %2124 = vmatpush2.msra.mxu0 0.0
        %2125 = vmatprep.subr.mxu0 0.0
        %2126 = vmatpush2.msra.mxu0 0.0
        %2127 = vmatprep.subr.mxu0 0.0
        %2128 = vmatpush2.msra.mxu0 0.0
        %2129 = vmatprep.subr.mxu0 0.0
        %2130 = vmatpush2.msra.mxu0 0.0
        %2131 = vmatprep.mubr.f32.mxu0 0.0
        %2132 = vmatmul.mubr.f32.gmra.mxu0 %v2012
        %v2133 = vpop.f32.mrf.mxu0
        %v2134 = vadd.f32 %v2065, %v2133
        %v2135 = vpop.f32.mrf.mxu0
        %2136 = vmatprep.mubr.f32.mxu0 0.0
        %2137 = vmatmul.mubr.f32.gmra.mxu0 %v2013
        %v2138 = vpop.f32.mrf.mxu0
        %v2139 = vadd.f32 %v2065, %v2138
        %v2140 = vpop.f32.mrf.mxu0
        %2141 = vmatprep.mubr.f32.mxu0 0.0
        %2142 = vmatmul.mubr.f32.gmra.mxu0 %v2014
        %v2143 = vpop.f32.mrf.mxu0
        %v2144 = vadd.f32 %v2065, %v2143
        %v2145 = vpop.f32.mrf.mxu0
        %2146 = vmatprep.mubr.f32.mxu0 0.0
        %2147 = vmatmul.mubr.f32.gmra.mxu0 %v2015
        %v2148 = vpop.f32.mrf.mxu0
        %v2149 = vadd.f32 %v2065, %v2148
        %v2150 = vpop.f32.mrf.mxu0
        %2151 = vmatprep.mubr.f32.mxu0 0.0
        %2152 = vmatmul.mubr.f32.gmra.mxu0 %v2016
        %v2153 = vpop.f32.mrf.mxu0
        %v2154 = vadd.f32 %v2065, %v2153
        %v2155 = vpop.f32.mrf.mxu0
        %2156 = vmatprep.mubr.f32.mxu0 0.0
        %2157 = vmatmul.mubr.f32.gmra.mxu0 %v2017
        %v2158 = vpop.f32.mrf.mxu0
        %v2159 = vadd.f32 %v2065, %v2158
        %v2160 = vpop.f32.mrf.mxu0
        %2161 = vmatprep.mubr.f32.mxu0 0.0
        %2162 = vmatmul.mubr.f32.gmra.mxu0 %v2018
        %v2163 = vpop.f32.mrf.mxu0
        %v2164 = vadd.f32 %v2065, %v2163
        %v2165 = vpop.f32.mrf.mxu0
        %2166 = vmatprep.mubr.f32.mxu0 0.0
        %2167 = vmatmul.mubr.f32.gmra.mxu0 %v2019
        %v2168 = vpop.f32.mrf.mxu0
        %v2169 = vadd.f32 %v2065, %v2168
        %v2170 = vpop.f32.mrf.mxu0
        %2171 = vmatprep.mubr.f32.mxu0 0.0
        %2172 = vmatmul.mubr.f32.gmra.mxu0 %v2020
        %v2173 = vpop.f32.mrf.mxu0
        %v2174 = vadd.f32 %v2065, %v2173
        %v2175 = vpop.f32.mrf.mxu0
        %2176 = vmatprep.mubr.f32.mxu0 0.0
        %2177 = vmatmul.mubr.f32.gmra.mxu0 %v2021
        %v2178 = vpop.f32.mrf.mxu0
        %v2179 = vadd.f32 %v2065, %v2178
        %v2180 = vpop.f32.mrf.mxu0
        %2181 = vmatprep.mubr.f32.mxu0 0.0
        %2182 = vmatmul.mubr.f32.gmra.mxu0 %v2022
        %v2183 = vpop.f32.mrf.mxu0
        %v2184 = vadd.f32 %v2065, %v2183
        %v2185 = vpop.f32.mrf.mxu0
        %2186 = vmatprep.mubr.f32.mxu0 0.0
        %2187 = vmatmul.mubr.f32.gmra.mxu0 %v2023
        %v2188 = vpop.f32.mrf.mxu0
        %v2189 = vadd.f32 %v2065, %v2188
        %v2190 = vpop.f32.mrf.mxu0
        %2191 = vmatprep.mubr.f32.mxu0 0.0
        %2192 = vmatmul.mubr.f32.gmra.mxu0 %v2024
        %v2193 = vpop.f32.mrf.mxu0
        %v2194 = vadd.f32 %v2065, %v2193
        %v2195 = vpop.f32.mrf.mxu0
        %2196 = vmatprep.mubr.f32.mxu0 0.0
        %2197 = vmatmul.mubr.f32.gmra.mxu0 %v2025
        %v2198 = vpop.f32.mrf.mxu0
        %v2199 = vadd.f32 %v2065, %v2198
        %v2200 = vpop.f32.mrf.mxu0
        %2201 = vmatprep.mubr.f32.mxu0 0.0
        %2202 = vmatmul.mubr.f32.gmra.mxu0 %v2026
        %v2203 = vpop.f32.mrf.mxu0
        %v2204 = vadd.f32 %v2065, %v2203
        %v2205 = vpop.f32.mrf.mxu0
        %2206 = vmatprep.mubr.f32.mxu0 0.0
        %2207 = vmatmul.mubr.f32.gmra.mxu0 %v2027
        %v2208 = vpop.f32.mrf.mxu0
        %v2209 = vadd.f32 %v2065, %v2208
        %v2210 = vpop.f32.mrf.mxu0
        %2211 = vmatprep.mubr.f32.mxu0 0.0
        %2212 = vmatmul.mubr.f32.gmra.mxu0 %v2028
        %v2213 = vpop.f32.mrf.mxu0
        %v2214 = vadd.f32 %v2065, %v2213
        %v2215 = vpop.f32.mrf.mxu0
        %2216 = vmatprep.mubr.f32.mxu0 0.0
        %2217 = vmatmul.mubr.f32.gmra.mxu0 %v2029
        %v2218 = vpop.f32.mrf.mxu0
        %v2219 = vadd.f32 %v2065, %v2218
        %v2220 = vpop.f32.mrf.mxu0
        %2221 = vmatprep.mubr.f32.mxu0 0.0
        %2222 = vmatmul.mubr.f32.gmra.mxu0 %v2030
        %v2223 = vpop.f32.mrf.mxu0
        %v2224 = vadd.f32 %v2065, %v2223
        %v2225 = vpop.f32.mrf.mxu0
        %2226 = vmatprep.mubr.f32.mxu0 0.0
        %2227 = vmatmul.mubr.f32.gmra.mxu0 %v2031
        %v2228 = vpop.f32.mrf.mxu0
        %v2229 = vadd.f32 %v2065, %v2228
        %v2230 = vpop.f32.mrf.mxu0
        %2231 = vmatprep.mubr.f32.mxu0 0.0
        %2232 = vmatmul.mubr.f32.gmra.mxu0 %v2032
        %v2233 = vpop.f32.mrf.mxu0
        %v2234 = vadd.f32 %v2065, %v2233
        %v2235 = vpop.f32.mrf.mxu0
        %2236 = vmatprep.mubr.f32.mxu0 0.0
        %2237 = vmatmul.mubr.f32.gmra.mxu0 %v2033
        %v2238 = vpop.f32.mrf.mxu0
        %v2239 = vadd.f32 %v2065, %v2238
        %v2240 = vpop.f32.mrf.mxu0
        %2241 = vmatprep.mubr.f32.mxu0 0.0
        %2242 = vmatmul.mubr.f32.gmra.mxu0 %v2034
        %v2243 = vpop.f32.mrf.mxu0
        %v2244 = vadd.f32 %v2065, %v2243
        %v2245 = vpop.f32.mrf.mxu0
        %2246 = vmatprep.mubr.f32.mxu0 0.0
        %2247 = vmatmul.mubr.f32.gmra.mxu0 %v2035
        %v2248 = vpop.f32.mrf.mxu0
        %v2249 = vadd.f32 %v2065, %v2248
        %v2250 = vpop.f32.mrf.mxu0
        %2251 = vmatprep.mubr.f32.mxu0 0.0
        %2252 = vmatmul.mubr.f32.gmra.mxu0 %v2036
        %v2253 = vpop.f32.mrf.mxu0
        %v2254 = vadd.f32 %v2065, %v2253
        %v2255 = vpop.f32.mrf.mxu0
        %2256 = vmatprep.mubr.f32.mxu0 0.0
        %2257 = vmatmul.mubr.f32.gmra.mxu0 %v2037
        %v2258 = vpop.f32.mrf.mxu0
        %v2259 = vadd.f32 %v2065, %v2258
        %v2260 = vpop.f32.mrf.mxu0
        %2261 = vmatprep.mubr.f32.mxu0 0.0
        %2262 = vmatmul.mubr.f32.gmra.mxu0 %v2038
        %v2263 = vpop.f32.mrf.mxu0
        %v2264 = vadd.f32 %v2065, %v2263
        %v2265 = vpop.f32.mrf.mxu0
        %2266 = vmatprep.mubr.f32.mxu0 0.0
        %2267 = vmatmul.mubr.f32.gmra.mxu0 %v2039
        %v2268 = vpop.f32.mrf.mxu0
        %v2269 = vadd.f32 %v2065, %v2268
        %v2270 = vpop.f32.mrf.mxu0
        %2271 = vmatprep.mubr.f32.mxu0 0.0
        %2272 = vmatmul.mubr.f32.gmra.mxu0 %v2040
        %v2273 = vpop.f32.mrf.mxu0
        %v2274 = vadd.f32 %v2065, %v2273
        %v2275 = vpop.f32.mrf.mxu0
        %2276 = vmatprep.mubr.f32.mxu0 0.0
        %2277 = vmatmul.mubr.f32.gmra.mxu0 %v2041
        %v2278 = vpop.f32.mrf.mxu0
        %v2279 = vadd.f32 %v2065, %v2278
        %v2280 = vpop.f32.mrf.mxu0
        %2281 = vmatprep.mubr.f32.mxu0 0.0
        %2282 = vmatmul.mubr.f32.gmra.mxu0 %v2042
        %v2283 = vpop.f32.mrf.mxu0
        %v2284 = vadd.f32 %v2065, %v2283
        %v2285 = vpop.f32.mrf.mxu0
        %2286 = vmatprep.mubr.f32.mxu0 0.0
        %2287 = vmatmul.mubr.f32.gmra.mxu0 %v2043
        %v2288 = vpop.f32.mrf.mxu0
        %v2289 = vadd.f32 %v2065, %v2288
        %v2290 = vpop.f32.mrf.mxu0
        %2291 = vdwg.mxu0
        %v2292 = vxor.u32 %v2134, 2147483648
        %v2293 = vxor.u32 %v2139, 2147483648
        %v2294 = vxor.u32 %v2144, 2147483648
        %v2295 = vxor.u32 %v2149, 2147483648
        %v2296 = vxor.u32 %v2154, 2147483648
        %v2297 = vxor.u32 %v2159, 2147483648
        %v2298 = vxor.u32 %v2164, 2147483648
        %v2299 = vxor.u32 %v2169, 2147483648
        %v2300 = vxor.u32 %v2174, 2147483648
        %v2301 = vxor.u32 %v2179, 2147483648
        %v2302 = vxor.u32 %v2184, 2147483648
        %v2303 = vxor.u32 %v2189, 2147483648
        %v2304 = vxor.u32 %v2194, 2147483648
        %v2305 = vxor.u32 %v2199, 2147483648
        %v2306 = vxor.u32 %v2204, 2147483648
        %v2307 = vxor.u32 %v2209, 2147483648
        %v2308 = vxor.u32 %v2214, 2147483648
        %v2309 = vxor.u32 %v2219, 2147483648
        %v2310 = vxor.u32 %v2224, 2147483648
        %v2311 = vxor.u32 %v2229, 2147483648
        %v2312 = vxor.u32 %v2234, 2147483648
        %v2313 = vxor.u32 %v2239, 2147483648
        %v2314 = vxor.u32 %v2244, 2147483648
        %v2315 = vxor.u32 %v2249, 2147483648
        %v2316 = vxor.u32 %v2254, 2147483648
        %v2317 = vxor.u32 %v2259, 2147483648
        %v2318 = vxor.u32 %v2264, 2147483648
        %v2319 = vxor.u32 %v2269, 2147483648
        %v2320 = vxor.u32 %v2274, 2147483648
        %v2321 = vxor.u32 %v2279, 2147483648
        %v2322 = vxor.u32 %v2284, 2147483648
        %v2323 = vxor.u32 %v2289, 2147483648
        %v2324 = vmul.f32 %v2292, 1.442695
        %v2325 = vpow.pop %v2324
        %v2326 = vmul.f32 %v2293, 1.442695
        %v2327 = vpow.pop %v2326
        %v2328 = vmul.f32 %v2294, 1.442695
        %v2329 = vpow.pop %v2328
        %v2330 = vmul.f32 %v2295, 1.442695
        %v2331 = vpow.pop %v2330
        %v2332 = vmul.f32 %v2296, 1.442695
        %v2333 = vpow.pop %v2332
        %v2334 = vmul.f32 %v2297, 1.442695
        %v2335 = vpow.pop %v2334
        %v2336 = vmul.f32 %v2298, 1.442695
        %v2337 = vpow.pop %v2336
        %v2338 = vmul.f32 %v2299, 1.442695
        %v2339 = vpow.pop %v2338
        %v2340 = vmul.f32 %v2300, 1.442695
        %v2341 = vpow.pop %v2340
        %v2342 = vmul.f32 %v2301, 1.442695
        %v2343 = vpow.pop %v2342
        %v2344 = vmul.f32 %v2302, 1.442695
        %v2345 = vpow.pop %v2344
        %v2346 = vmul.f32 %v2303, 1.442695
        %v2347 = vpow.pop %v2346
        %v2348 = vmul.f32 %v2304, 1.442695
        %v2349 = vpow.pop %v2348
        %v2350 = vmul.f32 %v2305, 1.442695
        %v2351 = vpow.pop %v2350
        %v2352 = vmul.f32 %v2306, 1.442695
        %v2353 = vpow.pop %v2352
        %v2354 = vmul.f32 %v2307, 1.442695
        %v2355 = vpow.pop %v2354
        %v2356 = vmul.f32 %v2308, 1.442695
        %v2357 = vpow.pop %v2356
        %v2358 = vmul.f32 %v2309, 1.442695
        %v2359 = vpow.pop %v2358
        %v2360 = vmul.f32 %v2310, 1.442695
        %v2361 = vpow.pop %v2360
        %v2362 = vmul.f32 %v2311, 1.442695
        %v2363 = vpow.pop %v2362
        %v2364 = vmul.f32 %v2312, 1.442695
        %v2365 = vpow.pop %v2364
        %v2366 = vmul.f32 %v2313, 1.442695
        %v2367 = vpow.pop %v2366
        %v2368 = vmul.f32 %v2314, 1.442695
        %v2369 = vpow.pop %v2368
        %v2370 = vmul.f32 %v2315, 1.442695
        %v2371 = vpow.pop %v2370
        %v2372 = vmul.f32 %v2316, 1.442695
        %v2373 = vpow.pop %v2372
        %v2374 = vmul.f32 %v2317, 1.442695
        %v2375 = vpow.pop %v2374
        %v2376 = vmul.f32 %v2318, 1.442695
        %v2377 = vpow.pop %v2376
        %v2378 = vmul.f32 %v2319, 1.442695
        %v2379 = vpow.pop %v2378
        %v2380 = vmul.f32 %v2320, 1.442695
        %v2381 = vpow.pop %v2380
        %v2382 = vmul.f32 %v2321, 1.442695
        %v2383 = vpow.pop %v2382
        %v2384 = vmul.f32 %v2322, 1.442695
        %v2385 = vpow.pop %v2384
        %v2386 = vmul.f32 %v2323, 1.442695
        %v2387 = vpow.pop %v2386
        %v2388 = vadd.f32 %v2325, 1.0
        %v2389 = vadd.f32 %v2327, 1.0
        %v2390 = vadd.f32 %v2329, 1.0
        %v2391 = vadd.f32 %v2331, 1.0
        %v2392 = vadd.f32 %v2333, 1.0
        %v2393 = vadd.f32 %v2335, 1.0
        %v2394 = vadd.f32 %v2337, 1.0
        %v2395 = vadd.f32 %v2339, 1.0
        %v2396 = vadd.f32 %v2341, 1.0
        %v2397 = vadd.f32 %v2343, 1.0
        %v2398 = vadd.f32 %v2345, 1.0
        %v2399 = vadd.f32 %v2347, 1.0
        %v2400 = vadd.f32 %v2349, 1.0
        %v2401 = vadd.f32 %v2351, 1.0
        %v2402 = vadd.f32 %v2353, 1.0
        %v2403 = vadd.f32 %v2355, 1.0
        %v2404 = vadd.f32 %v2357, 1.0
        %v2405 = vadd.f32 %v2359, 1.0
        %v2406 = vadd.f32 %v2361, 1.0
        %v2407 = vadd.f32 %v2363, 1.0
        %v2408 = vadd.f32 %v2365, 1.0
        %v2409 = vadd.f32 %v2367, 1.0
        %v2410 = vadd.f32 %v2369, 1.0
        %v2411 = vadd.f32 %v2371, 1.0
        %v2412 = vadd.f32 %v2373, 1.0
        %v2413 = vadd.f32 %v2375, 1.0
        %v2414 = vadd.f32 %v2377, 1.0
        %v2415 = vadd.f32 %v2379, 1.0
        %v2416 = vadd.f32 %v2381, 1.0
        %v2417 = vadd.f32 %v2383, 1.0
        %v2418 = vadd.f32 %v2385, 1.0
        %v2419 = vadd.f32 %v2387, 1.0
        %v2420 = vrcp.pop %v2388
        %v2421 = vmul.f32 1.0, %v2420
        %v2422 = vrcp.pop %v2389
        %v2423 = vmul.f32 1.0, %v2422
        %v2424 = vrcp.pop %v2390
        %v2425 = vmul.f32 1.0, %v2424
        %v2426 = vrcp.pop %v2391
        %v2427 = vmul.f32 1.0, %v2426
        %v2428 = vrcp.pop %v2392
        %v2429 = vmul.f32 1.0, %v2428
        %v2430 = vrcp.pop %v2393
        %v2431 = vmul.f32 1.0, %v2430
        %v2432 = vrcp.pop %v2394
        %v2433 = vmul.f32 1.0, %v2432
        %v2434 = vrcp.pop %v2395
        %v2435 = vmul.f32 1.0, %v2434
        %v2436 = vrcp.pop %v2396
        %v2437 = vmul.f32 1.0, %v2436
        %v2438 = vrcp.pop %v2397
        %v2439 = vmul.f32 1.0, %v2438
        %v2440 = vrcp.pop %v2398
        %v2441 = vmul.f32 1.0, %v2440
        %v2442 = vrcp.pop %v2399
        %v2443 = vmul.f32 1.0, %v2442
        %v2444 = vrcp.pop %v2400
        %v2445 = vmul.f32 1.0, %v2444
        %v2446 = vrcp.pop %v2401
        %v2447 = vmul.f32 1.0, %v2446
        %v2448 = vrcp.pop %v2402
        %v2449 = vmul.f32 1.0, %v2448
        %v2450 = vrcp.pop %v2403
        %v2451 = vmul.f32 1.0, %v2450
        %v2452 = vrcp.pop %v2404
        %v2453 = vmul.f32 1.0, %v2452
        %v2454 = vrcp.pop %v2405
        %v2455 = vmul.f32 1.0, %v2454
        %v2456 = vrcp.pop %v2406
        %v2457 = vmul.f32 1.0, %v2456
        %v2458 = vrcp.pop %v2407
        %v2459 = vmul.f32 1.0, %v2458
        %v2460 = vrcp.pop %v2408
        %v2461 = vmul.f32 1.0, %v2460
        %v2462 = vrcp.pop %v2409
        %v2463 = vmul.f32 1.0, %v2462
        %v2464 = vrcp.pop %v2410
        %v2465 = vmul.f32 1.0, %v2464
        %v2466 = vrcp.pop %v2411
        %v2467 = vmul.f32 1.0, %v2466
        %v2468 = vrcp.pop %v2412
        %v2469 = vmul.f32 1.0, %v2468
        %v2470 = vrcp.pop %v2413
        %v2471 = vmul.f32 1.0, %v2470
        %v2472 = vrcp.pop %v2414
        %v2473 = vmul.f32 1.0, %v2472
        %v2474 = vrcp.pop %v2415
        %v2475 = vmul.f32 1.0, %v2474
        %v2476 = vrcp.pop %v2416
        %v2477 = vmul.f32 1.0, %v2476
        %v2478 = vrcp.pop %v2417
        %v2479 = vmul.f32 1.0, %v2478
        %v2480 = vrcp.pop %v2418
        %v2481 = vmul.f32 1.0, %v2480
        %v2482 = vrcp.pop %v2419
        %v2483 = vmul.f32 1.0, %v2482
        %2484 = vst [vmem:[%s545] sm:$0xff] %v2421
        %2485 = vst [vmem:[%s545 + $0x8] sm:$0xff] %v2423
        %2486 = vst [vmem:[%s545 + $0x10] sm:$0xff] %v2425
        %2487 = vst [vmem:[%s545 + $0x18] sm:$0xff] %v2427
        %2488 = vst [vmem:[%s545 + $0x20] sm:$0xff] %v2429
        %2489 = vst [vmem:[%s545 + $0x28] sm:$0xff] %v2431
        %2490 = vst [vmem:[%s545 + $0x30] sm:$0xff] %v2433
        %2491 = vst [vmem:[%s545 + $0x38] sm:$0xff] %v2435
        %2492 = vst [vmem:[%s545 + $0x40] sm:$0xff] %v2437
        %2493 = vst [vmem:[%s545 + $0x48] sm:$0xff] %v2439
        %2494 = vst [vmem:[%s545 + $0x50] sm:$0xff] %v2441
        %2495 = vst [vmem:[%s545 + $0x58] sm:$0xff] %v2443
        %2496 = vst [vmem:[%s545 + $0x60] sm:$0xff] %v2445
        %2497 = vst [vmem:[%s545 + $0x68] sm:$0xff] %v2447
        %2498 = vst [vmem:[%s545 + $0x70] sm:$0xff] %v2449
        %2499 = vst [vmem:[%s545 + $0x78] sm:$0xff] %v2451
        %2500 = vst [vmem:[%s545 + $0x80] sm:$0xff] %v2453
        %2501 = vst [vmem:[%s545 + $0x88] sm:$0xff] %v2455
        %2502 = vst [vmem:[%s545 + $0x90] sm:$0xff] %v2457
        %2503 = vst [vmem:[%s545 + $0x98] sm:$0xff] %v2459
        %2504 = vst [vmem:[%s545 + $0xa0] sm:$0xff] %v2461
        %2505 = vst [vmem:[%s545 + $0xa8] sm:$0xff] %v2463
        %2506 = vst [vmem:[%s545 + $0xb0] sm:$0xff] %v2465
        %2507 = vst [vmem:[%s545 + $0xb8] sm:$0xff] %v2467
        %2508 = vst [vmem:[%s545 + $0xc0] sm:$0xff] %v2469
        %2509 = vst [vmem:[%s545 + $0xc8] sm:$0xff] %v2471
        %2510 = vst [vmem:[%s545 + $0xd0] sm:$0xff] %v2473
        %2511 = vst [vmem:[%s545 + $0xd8] sm:$0xff] %v2475
        %2512 = vst [vmem:[%s545 + $0xe0] sm:$0xff] %v2477
        %2513 = vst [vmem:[%s545 + $0xe8] sm:$0xff] %v2479
        %2514 = vst [vmem:[%s545 + $0xf0] sm:$0xff] %v2481
        %2515 = vst [vmem:[%s545 + $0xf8] sm:$0xff] %v2483
        %s2516 = sand.u32 %s319, 1
        %s2517 = scalar_lea.sflag [#allocation4], %s2516
        %s2518 = sand.u32 %s319, 1
        %s2519 = smul.addr %s2518, 256
        %s2520 = scalar_lea.vmem [#allocation14], %s2519
        // Predicated region
        $region101: #{tpu_custom_call.1} parent=71 // pred_check
          %p2521 = pneg %p329
        $region102: #{tpu_custom_call.1} parent=71 // pred_check_branch
          %2523 = sbr.rel (%p2521) target = $region104
        $region103: #{tpu_custom_call.1} parent=71 // pred_region
          %s2524 = smul.u32 32, %s33
          %s2526 = ssub.s32 4096, 4096
          %2527 = vsyncadd %s2517, %s2526
          %s2528 = smul.addr %s2524, 128
          %s2529 = scalar_lea.hbm %s13, %s2528
          %s2530 = sshll.u32 %s2520, 4
          %s2531 = int_to_ptr.vmem [resolvable:$true] %s2530
          %2536 = dma.vmem_to_hbm [thread:$0]  %s2531, 4096, %s2529, %s2517, 128, 128, 8
        $region104: #{tpu_custom_call.1} parent=71 // pred_fallthru
          _
      $region72: #{tpu_custom_call.1} parent=5 // pred_fallthru
        _
      %p2537 = scmp.le.s32.totalorder 2, %s28
      // Predicated region
      $region105: #{tpu_custom_call.1} parent=5 // pred_check
        %p2538 = pneg %p2537
      $region106: #{tpu_custom_call.1} parent=5 // pred_check_branch
        %2540 = sbr.rel (%p2538) target = $region108
      $region107: #{tpu_custom_call.1} parent=5 // pred_region
        %s2541 = ssub.s32 %s28, 2
        // Predicated region
        $region109: #{tpu_custom_call.1} parent=107 // pred_check
          %p2542 = pneg %p335
        $region110: #{tpu_custom_call.1} parent=107 // pred_check_branch
          %2544 = sbr.rel (%p2542) target = $region112
        $region111: #{tpu_custom_call.1} parent=107 // pred_region
          %s2545 = sand.u32 %s320, 1
          %s2546 = scalar_lea.sflag [#allocation4], %s2545
          %s2547 = sand.u32 %s320, 1
          %s2548 = smul.addr %s2547, 256
          %s2549 = scalar_lea.vmem [#allocation14], %s2548
          %2550 = dma.done %s2546, 4096
        $region112: #{tpu_custom_call.1} parent=107 // pred_fallthru
          _
      $region108: #{tpu_custom_call.1} parent=5 // pred_fallthru
        _
    $region6: #{tpu_custom_call.1} parent=1 // loop_footer
      %s32 = sadd.s32 1, %s28
    $region7: #{tpu_custom_call.1} parent=1 // loop_footer_branch
      %27 = sbr.rel target = $region3
    $region8: #{tpu_custom_call.1} parent=1 // loop_exit
      _
    %2551 = vsyncpa [#allocation3], 1
    %s2552 = scalar_lea.sflag [#allocation3], 1
    %2553 = vsyncpa %s2552, 1
    %2554 = vsyncpa [#allocation6], 1
    %2555 = vsyncpa [#allocation9], 1
    %2556 = vsyncpa [#allocation12], 1
    %2557 = vsyncpa [#allocation4], 1
    %s2558 = scalar_lea.sflag [#allocation4], 1
    %2559 = vsyncpa %s2558, 1

</llo_original>
